<compile_context>
chip_gen: v7x
topology: tpu7x:2x2x1
jax: 0.10.0
libtpu: 0.0.40
codegen_flags: <defaults>
</compile_context>

<pallas_src>
import math

import jax
import jax.numpy as jnp
from jax import lax
from jax.experimental import pallas as pl
from jax.experimental.pallas import tpu as pltpu

# Keep f32 matmuls at full precision in both the kernels and the XLA reference
# so the correctness check is tight.
jax.config.update("jax_default_matmul_precision", "highest")


def _round_up(a, b):
    return ((a + b - 1) // b) * b


# ---------------------------------------------------------------------------
# Kernel A: fused Q/K/V projection   (M, D) @ (D, D) x3
# ---------------------------------------------------------------------------
def _qkv_kernel(x_ref, wq_ref, wk_ref, wv_ref, q_ref, k_ref, v_ref):
    x = x_ref[...]
    q_ref[...] = jnp.dot(x, wq_ref[...], preferred_element_type=jnp.float32).astype(q_ref.dtype)
    k_ref[...] = jnp.dot(x, wk_ref[...], preferred_element_type=jnp.float32).astype(k_ref.dtype)
    v_ref[...] = jnp.dot(x, wv_ref[...], preferred_element_type=jnp.float32).astype(v_ref.dtype)


def qkv_proj(x2d, wq_t, wk_t, wv_t, *, tm=512):
    """x2d: (M, D) -> (q2d, k2d, v2d) each (M, D)."""
    M, D = x2d.shape
    tm = min(tm, _round_up(M, 8))          # 8-aligned row tile, large when M is large
    m_pad = _round_up(M, tm)
    if m_pad != M:
        x2d = jnp.pad(x2d, ((0, m_pad - M), (0, 0)))

    row_spec = pl.BlockSpec((tm, D), lambda i: (i, 0))
    w_spec = pl.BlockSpec((D, D), lambda i: (0, 0))     # weights resident in VMEM

    q, k, v = pl.pallas_call(
        _qkv_kernel,
        out_shape=[
            jax.ShapeDtypeStruct((m_pad, D), x2d.dtype),
            jax.ShapeDtypeStruct((m_pad, D), x2d.dtype),
            jax.ShapeDtypeStruct((m_pad, D), x2d.dtype),
        ],
        grid=(m_pad // tm,),
        in_specs=[row_spec, w_spec, w_spec, w_spec],
        out_specs=[row_spec, row_spec, row_spec],
        compiler_params=pltpu.CompilerParams(dimension_semantics=("parallel",)),
    )(x2d, wq_t, wk_t, wv_t)

    if m_pad != M:
        q, k, v = q[:M], k[:M], v[:M]
    return q, k, v


# ---------------------------------------------------------------------------
# Kernel B: per-(batch, head) attention fused with the output projection.
# Heads are the (last, "arbitrary") reduction axis; the output block is
# resident across it and accumulated in an f32 VMEM scratch.
# ---------------------------------------------------------------------------
def _make_attn_kernel(scale):
    def kernel(q_ref, k_ref, v_ref, wo_ref, o_ref, acc_ref):
        h = pl.program_id(1)

        @pl.when(h == 0)
        def _():
            acc_ref[...] = jnp.zeros_like(acc_ref)

        q = q_ref[...]            # (S, Dh)
        k = k_ref[...]            # (S, Dh)
        v = v_ref[...]            # (S, Dh)

        # scores = q @ k^T / sqrt(Dh)   (contract last dims, no explicit transpose)
        s = lax.dot_general(
            q, k, (((1,), (1,)), ((), ())),
            preferred_element_type=jnp.float32,
        ) * scale

        # numerically-stable row softmax
        m = jnp.max(s, axis=-1, keepdims=True)
        e = jnp.exp(s - m)
        l = jnp.sum(e, axis=-1, keepdims=True)
        p = e * pl.reciprocal(l, approx=False)

        # this head's context, folded directly into the output projection:
        # out += attn_h @ Wo^T[h*Dh:(h+1)*Dh, :]
        attn = jnp.dot(p, v, preferred_element_type=jnp.float32)          # (S, Dh)
        acc_ref[...] += jnp.dot(attn, wo_ref[...],
                                preferred_element_type=jnp.float32)        # (S, D)

        @pl.when(h == pl.num_programs(1) - 1)
        def _():
            o_ref[...] = acc_ref[...].astype(o_ref.dtype)

    return kernel


def attention_core(q, k, v, wo_t):
    """q,k,v: (B, H, S, Dh); wo_t: (H*Dh, D) -> (B, S, D)."""
    B, H, S, Dh = q.shape
    D = wo_t.shape[1]
    scale = 1.0 / math.sqrt(Dh)

    qkv_spec = pl.BlockSpec((None, None, S, Dh), lambda b, h: (b, h, 0, 0))
    wo_spec = pl.BlockSpec((Dh, D), lambda b, h: (h, 0))
    out_spec = pl.BlockSpec((None, S, D), lambda b, h: (b, 0, 0))

    # TODO(synk): for long sequences, tile S (flash-style online softmax) instead
    # of loading the full (S, Dh) / (S, S) blocks per head.
    return pl.pallas_call(
        _make_attn_kernel(scale),
        out_shape=jax.ShapeDtypeStruct((B, S, D), q.dtype),
        grid=(B, H),
        in_specs=[qkv_spec, qkv_spec, qkv_spec, wo_spec],
        out_specs=out_spec,
        scratch_shapes=[pltpu.VMEM((S, D), jnp.float32)],
        compiler_params=pltpu.CompilerParams(
            dimension_semantics=("parallel", "arbitrary")),
    )(q, k, v, wo_t)


# ---------------------------------------------------------------------------
# Full forward pass
# ---------------------------------------------------------------------------
def attention_forward(x, wq_t, wk_t, wv_t, wo_t, num_heads):
    """x: (B, S, D) -> (B, S, D). Weights are (D, D) pre-transposed (= W^T)."""
    B, S, D = x.shape
    Dh = D // num_heads

    x2d = x.reshape(B * S, D)
    q2d, k2d, v2d = qkv_proj(x2d, wq_t, wk_t, wv_t)

    # Head split + transpose is pure layout plumbing; keep it in the wrapper.
    def split_heads(t):
        return t.reshape(B, S, num_heads, Dh).transpose(0, 2, 1, 3)

    q, k, v = split_heads(q2d), split_heads(k2d), split_heads(v2d)
    return attention_core(q, k, v, wo_t)


def init_params(key, dim):
    """PyTorch nn.Linear(bias=False) default init, stored as W^T (in, out)."""
    kq, kk, kv, ko = jax.random.split(key, 4)
    bound = 1.0 / math.sqrt(dim)
    wq_t = jax.random.uniform(kq, (dim, dim), jnp.float32, -bound, bound)
    wk_t = jax.random.uniform(kk, (dim, dim), jnp.float32, -bound, bound)
    wv_t = jax.random.uniform(kv, (dim, dim), jnp.float32, -bound, bound)
    wo_t = jax.random.uniform(ko, (dim, dim), jnp.float32, -bound, bound)
    return wq_t, wk_t, wv_t, wo_t


if __name__ == "__main__":
    key = jax.random.PRNGKey(0)
    pkey, xkey = jax.random.split(key)

    batch, seq_len, dim, num_heads = 2, 8, 32, 4
    head_dim = dim // num_heads

    wq_t, wk_t, wv_t, wo_t = init_params(pkey, dim)
    x = jax.random.normal(xkey, (batch, seq_len, dim), jnp.float32)

    out = attention_forward(x, wq_t, wk_t, wv_t, wo_t, num_heads)
    out = jax.block_until_ready(out)

    # Pure-JAX reference (same math as the PyTorch module).
    q = (x @ wq_t).reshape(batch, seq_len, num_heads, head_dim).transpose(0, 2, 1, 3)
    k = (x @ wk_t).reshape(batch, seq_len, num_heads, head_dim).transpose(0, 2, 1, 3)
    v = (x @ wv_t).reshape(batch, seq_len, num_heads, head_dim).transpose(0, 2, 1, 3)
    s = jnp.einsum("bhqd,bhkd->bhqk", q, k) / math.sqrt(head_dim)
    p = jax.nn.softmax(s, axis=-1)
    o = jnp.einsum("bhqk,bhkd->bhqd", p, v).transpose(0, 2, 1, 3).reshape(batch, seq_len, dim)
    ref = o @ wo_t

    assert out.shape == (batch, seq_len, dim)
    max_err = float(jnp.max(jnp.abs(out - ref)))
    assert jnp.allclose(out, ref, atol=5e-3, rtol=5e-3), max_err

    print("KERNEL_OK")
</pallas_src>

<mosaic_0001>
module attributes {stable_mosaic.version = 11 : i64} {
  func.func @_qkv_kernel(%arg0: i32, %arg1: memref<16x32xf32, #tpu.memory_space<vmem>>, %arg2: memref<32x32xf32, #tpu.memory_space<vmem>>, %arg3: memref<32x32xf32, #tpu.memory_space<vmem>>, %arg4: memref<32x32xf32, #tpu.memory_space<vmem>>, %arg5: memref<16x32xf32, #tpu.memory_space<vmem>>, %arg6: memref<16x32xf32, #tpu.memory_space<vmem>>, %arg7: memref<16x32xf32, #tpu.memory_space<vmem>>) attributes {dimension_semantics = [#tpu.dimension_semantics<parallel>], iteration_bounds = array<i64: 1>, scalar_prefetch = 0 : i64, scratch_operands = 0 : i64, tpu.core_type = #tpu.core_type<tc>, window_params = [{transform_indices = @transform_0, window_bounds = array<i64: 16, 32>}, {pipeline_mode = #tpu.pipeline_mode<synchronous>, transform_indices = @transform_1, window_bounds = array<i64: 32, 32>}, {pipeline_mode = #tpu.pipeline_mode<synchronous>, transform_indices = @transform_2, window_bounds = array<i64: 32, 32>}, {pipeline_mode = #tpu.pipeline_mode<synchronous>, transform_indices = @transform_3, window_bounds = array<i64: 32, 32>}, {transform_indices = @transform_4, window_bounds = array<i64: 16, 32>}, {transform_indices = @transform_5, window_bounds = array<i64: 16, 32>}, {transform_indices = @transform_6, window_bounds = array<i64: 16, 32>}]} {
    %c0 = arith.constant 0 : index
    %c0_0 = arith.constant 0 : index
    %0 = vector.load %arg1[%c0, %c0_0] : memref<16x32xf32, #tpu.memory_space<vmem>>, vector<16x32xf32>
    %c0_1 = arith.constant 0 : index
    %c0_2 = arith.constant 0 : index
    %1 = vector.load %arg2[%c0_1, %c0_2] : memref<32x32xf32, #tpu.memory_space<vmem>>, vector<32x32xf32>
    %cst = arith.constant dense<0.000000e+00> : vector<16x32xf32>
    %2 = tpu.matmul %0, %1, %cst {dimension_numbers = #tpu.dot_dimension_numbers<[1], [0], [0], [1], [0, 0, 1, 1], [], []>, precision = #tpu.contract_precision<fp32>} : vector<16x32xf32>, vector<32x32xf32>, vector<16x32xf32> -> vector<16x32xf32>
    %c0_3 = arith.constant 0 : index
    %c0_4 = arith.constant 0 : index
    %3 = vector.load %arg5[%c0_3, %c0_4] : memref<16x32xf32, #tpu.memory_space<vmem>>, vector<16x32xf32>
    tpu.vector_store %arg5[%c0_3, %c0_4], %2 {strides = array<i32>} : memref<16x32xf32, #tpu.memory_space<vmem>>, vector<16x32xf32>,
    %c0_5 = arith.constant 0 : index
    %c0_6 = arith.constant 0 : index
    %4 = vector.load %arg3[%c0_5, %c0_6] : memref<32x32xf32, #tpu.memory_space<vmem>>, vector<32x32xf32>
    %cst_7 = arith.constant dense<0.000000e+00> : vector<16x32xf32>
    %5 = tpu.matmul %0, %4, %cst_7 {dimension_numbers = #tpu.dot_dimension_numbers<[1], [0], [0], [1], [0, 0, 1, 1], [], []>, precision = #tpu.contract_precision<fp32>} : vector<16x32xf32>, vector<32x32xf32>, vector<16x32xf32> -> vector<16x32xf32>
    %c0_8 = arith.constant 0 : index
    %c0_9 = arith.constant 0 : index
    %6 = vector.load %arg6[%c0_8, %c0_9] : memref<16x32xf32, #tpu.memory_space<vmem>>, vector<16x32xf32>
    tpu.vector_store %arg6[%c0_8, %c0_9], %5 {strides = array<i32>} : memref<16x32xf32, #tpu.memory_space<vmem>>, vector<16x32xf32>,
    %c0_10 = arith.constant 0 : index
    %c0_11 = arith.constant 0 : index
    %7 = vector.load %arg4[%c0_10, %c0_11] : memref<32x32xf32, #tpu.memory_space<vmem>>, vector<32x32xf32>
    %cst_12 = arith.constant dense<0.000000e+00> : vector<16x32xf32>
    %8 = tpu.matmul %0, %7, %cst_12 {dimension_numbers = #tpu.dot_dimension_numbers<[1], [0], [0], [1], [0, 0, 1, 1], [], []>, precision = #tpu.contract_precision<fp32>} : vector<16x32xf32>, vector<32x32xf32>, vector<16x32xf32> -> vector<16x32xf32>
    %c0_13 = arith.constant 0 : index
    %c0_14 = arith.constant 0 : index
    %9 = vector.load %arg7[%c0_13, %c0_14] : memref<16x32xf32, #tpu.memory_space<vmem>>, vector<16x32xf32>
    tpu.vector_store %arg7[%c0_13, %c0_14], %8 {strides = array<i32>} : memref<16x32xf32, #tpu.memory_space<vmem>>, vector<16x32xf32>,
    return
  }
  func.func @transform_0(%arg0: i32) -> (i32, i32) {
    %c0_i32 = arith.constant 0 : i32
    %c0_i32_0 = arith.constant 0 : i32
    return %arg0, %c0_i32 : i32, i32
  }
  func.func @transform_1(%arg0: i32) -> (i32, i32) {
    %c0_i32 = arith.constant 0 : i32
    %c0_i32_0 = arith.constant 0 : i32
    %c0_i32_1 = arith.constant 0 : i32
    return %c0_i32, %c0_i32_0 : i32, i32
  }
  func.func @transform_2(%arg0: i32) -> (i32, i32) {
    %c0_i32 = arith.constant 0 : i32
    %c0_i32_0 = arith.constant 0 : i32
    %c0_i32_1 = arith.constant 0 : i32
    return %c0_i32, %c0_i32_0 : i32, i32
  }
  func.func @transform_3(%arg0: i32) -> (i32, i32) {
    %c0_i32 = arith.constant 0 : i32
    %c0_i32_0 = arith.constant 0 : i32
    %c0_i32_1 = arith.constant 0 : i32
    return %c0_i32, %c0_i32_0 : i32, i32
  }
  func.func @transform_4(%arg0: i32) -> (i32, i32) {
    %c0_i32 = arith.constant 0 : i32
    %c0_i32_0 = arith.constant 0 : i32
    return %arg0, %c0_i32 : i32, i32
  }
  func.func @transform_5(%arg0: i32) -> (i32, i32) {
    %c0_i32 = arith.constant 0 : i32
    %c0_i32_0 = arith.constant 0 : i32
    return %arg0, %c0_i32 : i32, i32
  }
  func.func @transform_6(%arg0: i32) -> (i32, i32) {
    %c0_i32 = arith.constant 0 : i32
    %c0_i32_0 = arith.constant 0 : i32
    return %arg0, %c0_i32 : i32, i32
  }
}

</mosaic_0001>

<llo_original>
// kernel: tpu_custom_call.1
$region0: #{tpu_custom_call.1}
  #allocation0 [shape = 'u32[]', space=smem, size = 0x4, offset = 0x4, fixed_abs, tag = 'smem constant byte address 0x4 - core index']
  #allocation1 [shape = 'u32[144,128]{1,0:T(1,128)}', space=vmem, size = 0x12000, scoped, tag = 'internal scratch']
  %s0 = inlined_call_operand.hbm [shape: f32[16,32], index: 0, kind: input, shape index: {}]
  %s1 = inlined_call_operand.hbm [shape: f32[32,32], index: 1, kind: input, shape index: {}]
  %s2 = inlined_call_operand.hbm [shape: f32[32,32], index: 2, kind: input, shape index: {}]
  %s3 = inlined_call_operand.hbm [shape: f32[32,32], index: 3, kind: input, shape index: {}]
  %s4 = inlined_call_operand.hbm [shape: f32[16,32], index: 4, kind: output, shape index: {0}]
  %s5 = inlined_call_operand.hbm [shape: f32[16,32], index: 5, kind: output, shape index: {1}]
  %s6 = inlined_call_operand.hbm [shape: f32[16,32], index: 6, kind: output, shape index: {2}]
  %7 = xla_tuple %s4, %s5, %s6
  %s8 = sld [smem:[#allocation0]]
  $region58: #{tpu_custom_call.1} parent=0
    _
  %s10 = ssub.s32 1, %s8
  %s11 = scalar_select 0, %s10, %s8
  $region1: #{tpu_custom_call.1} parent=0
    #allocation2 [shape = 'u8[8192]{0}', space=vmem, size = 0x2000, scoped, tag = 'input window, operand 0, single buffered']
    #allocation3 [shape = 's32[1]{0}', space=sflag, size = 0x4, scoped, tag = 'scoped memory for tpu_custom_call.1']
    #allocation4 [shape = 's32[1]{0}', space=sflag, size = 0x4, scoped, tag = 'scoped memory for tpu_custom_call.1']
    #allocation5 [shape = 'u8[16384]{0}', space=vmem, size = 0x4000, scoped, tag = 'input window, operand 1, single buffered']
    #allocation6 [shape = 's32[1]{0}', space=sflag, size = 0x4, scoped, tag = 'scoped memory for tpu_custom_call.1']
    #allocation7 [shape = 'u8[16384]{0}', space=vmem, size = 0x4000, scoped, tag = 'input window, operand 2, single buffered']
    #allocation8 [shape = 'u8[16384]{0}', space=vmem, size = 0x4000, scoped, tag = 'input window, operand 3, single buffered']
    #allocation9 [shape = 's32[1]{0}', space=sflag, size = 0x4, scoped, tag = 'scoped memory for tpu_custom_call.1']
    #allocation10 [shape = 'u8[8192]{0}', space=vmem, size = 0x2000, scoped, tag = 'output window, operand 0, single buffered']
    #allocation11 [shape = 'u8[8192]{0}', space=vmem, size = 0x2000, scoped, tag = 'output window, operand 1, single buffered']
    #allocation12 [shape = 's32[1]{0}', space=sflag, size = 0x4, scoped, tag = 'scoped memory for tpu_custom_call.1']
    #allocation13 [shape = 'u8[8192]{0}', space=vmem, size = 0x2000, scoped, tag = 'output window, operand 2, single buffered']
    %12 = vsyncpa [#allocation3], 0
    %13 = vsyncpa [#allocation6], 0
    %14 = vsyncpa [#allocation9], 0
    %15 = vsyncpa [#allocation4], 0
    %16 = vsyncpa [#allocation12], 0
    // Predicated region
    $region2: #{tpu_custom_call.1} parent=1 // pred_check
      _
    $region3: #{tpu_custom_call.1} parent=1 // pred_check_branch
      %18 = sbr.rel (0) target = $region5
    $region4: #{tpu_custom_call.1} parent=1 // pred_region
      %s20 = ssub.s32 256, 256
      %21 = vsyncadd [#allocation3], %s20
      %s22 = sshll.u32 [#allocation2], 4
      %s23 = int_to_ptr.vmem [resolvable:$true] %s22
      %28 = dma.hbm_to_vmem [thread:$0]  %s0, 256, %s23, [#allocation3], 128, 128, 8
    $region5: #{tpu_custom_call.1} parent=1 // pred_fallthru
      _
    // Predicated region
    $region6: #{tpu_custom_call.1} parent=1 // pred_check
      _
    $region7: #{tpu_custom_call.1} parent=1 // pred_check_branch
      %30 = sbr.rel (0) target = $region9
    $region8: #{tpu_custom_call.1} parent=1 // pred_region
      %s32 = ssub.s32 512, 512
      %33 = vsyncadd [#allocation6], %s32
      %s34 = sshll.u32 [#allocation5], 4
      %s35 = int_to_ptr.vmem [resolvable:$true] %s34
      %40 = dma.hbm_to_vmem [thread:$0]  %s1, 512, %s35, [#allocation6], 128, 128, 8
    $region9: #{tpu_custom_call.1} parent=1 // pred_fallthru
      _
    // Predicated region
    $region10: #{tpu_custom_call.1} parent=1 // pred_check
      _
    $region11: #{tpu_custom_call.1} parent=1 // pred_check_branch
      %42 = sbr.rel (0) target = $region13
    $region12: #{tpu_custom_call.1} parent=1 // pred_region
      %s44 = ssub.s32 512, 512
      %45 = vsyncadd [#allocation6], %s44
      %s46 = sshll.u32 [#allocation7], 4
      %s47 = int_to_ptr.vmem [resolvable:$true] %s46
      %52 = dma.hbm_to_vmem [thread:$0]  %s2, 512, %s47, [#allocation6], 128, 128, 8
    $region13: #{tpu_custom_call.1} parent=1 // pred_fallthru
      _
    // Predicated region
    $region14: #{tpu_custom_call.1} parent=1 // pred_check
      _
    $region15: #{tpu_custom_call.1} parent=1 // pred_check_branch
      %54 = sbr.rel (0) target = $region17
    $region16: #{tpu_custom_call.1} parent=1 // pred_region
      %s56 = ssub.s32 512, 512
      %57 = vsyncadd [#allocation9], %s56
      %s58 = sshll.u32 [#allocation8], 4
      %s59 = int_to_ptr.vmem [resolvable:$true] %s58
      %64 = dma.hbm_to_vmem [thread:$0]  %s3, 512, %s59, [#allocation9], 128, 128, 8
    $region17: #{tpu_custom_call.1} parent=1 // pred_fallthru
      _
    // Predicated region
    $region18: #{tpu_custom_call.1} parent=1 // pred_check
      _
    $region19: #{tpu_custom_call.1} parent=1 // pred_check_branch
      %66 = sbr.rel (0) target = $region21
    $region20: #{tpu_custom_call.1} parent=1 // pred_region
      %67 = dma.done [#allocation3], 256
    $region21: #{tpu_custom_call.1} parent=1 // pred_fallthru
      _
    // Predicated region
    $region22: #{tpu_custom_call.1} parent=1 // pred_check
      _
    $region23: #{tpu_custom_call.1} parent=1 // pred_check_branch
      %69 = sbr.rel (0) target = $region25
    $region24: #{tpu_custom_call.1} parent=1 // pred_region
      %70 = dma.done [#allocation6], 512
    $region25: #{tpu_custom_call.1} parent=1 // pred_fallthru
      _
    // Predicated region
    $region26: #{tpu_custom_call.1} parent=1 // pred_check
      _
    $region27: #{tpu_custom_call.1} parent=1 // pred_check_branch
      %72 = sbr.rel (0) target = $region29
    $region28: #{tpu_custom_call.1} parent=1 // pred_region
      %73 = dma.done [#allocation6], 512
    $region29: #{tpu_custom_call.1} parent=1 // pred_fallthru
      _
    // Predicated region
    $region30: #{tpu_custom_call.1} parent=1 // pred_check
      _
    $region31: #{tpu_custom_call.1} parent=1 // pred_check_branch
      %75 = sbr.rel (0) target = $region33
    $region32: #{tpu_custom_call.1} parent=1 // pred_region
      %76 = dma.done [#allocation9], 512
    $region33: #{tpu_custom_call.1} parent=1 // pred_fallthru
      _
    %v77 = vld [vmem:[#allocation2] sm:$0xff]
    %v78 = vld [vmem:[#allocation2 + $0x8] sm:$0xff]
    %v79 = vld [vmem:[#allocation5] sm:$0xff]
    %v80 = vld [vmem:[#allocation5 + $0x8] sm:$0xff]
    %v81 = vld [vmem:[#allocation5 + $0x10] sm:$0xff]
    %v82 = vld [vmem:[#allocation5 + $0x18] sm:$0xff]
    %vm83 = vcmask 261120
    %v85 = vsel %vm83, %v77, 0
    %v88 = vsel %vm83, %v78, 0
    %90 = vmatprep.subr.mxu0 0.0
    %v91 = vand.u32 %v79, 4294901760
    %92 = vmatpush1.msra.mxu0 %v91
    %93 = vmatprep.subr.mxu0 0.0
    %v94 = vand.u32 %v80, 4294901760
    %95 = vmatpush1.msra.mxu0 %v94
    %96 = vmatprep.subr.mxu0 0.0
    %v97 = vand.u32 %v81, 4294901760
    %98 = vmatpush1.msra.mxu0 %v97
    %99 = vmatprep.subr.mxu0 0.0
    %v100 = vand.u32 %v82, 4294901760
    %101 = vmatpush1.msra.mxu0 %v100
    %102 = vmatprep.subr.mxu0 0.0
    %103 = vmatpush1.msra.mxu0 0.0
    %104 = vmatprep.subr.mxu0 0.0
    %105 = vmatpush1.msra.mxu0 0.0
    %106 = vmatprep.subr.mxu0 0.0
    %107 = vmatpush1.msra.mxu0 0.0
    %108 = vmatprep.subr.mxu0 0.0
    %109 = vmatpush1.msra.mxu0 0.0
    %110 = vmatprep.subr.mxu0 0.0
    %111 = vmatpush1.msra.mxu0 0.0
    %112 = vmatprep.subr.mxu0 0.0
    %113 = vmatpush1.msra.mxu0 0.0
    %114 = vmatprep.subr.mxu0 0.0
    %115 = vmatpush1.msra.mxu0 0.0
    %116 = vmatprep.subr.mxu0 0.0
    %117 = vmatpush1.msra.mxu0 0.0
    %118 = vmatprep.subr.mxu0 0.0
    %119 = vmatpush1.msra.mxu0 0.0
    %120 = vmatprep.subr.mxu0 0.0
    %121 = vmatpush1.msra.mxu0 0.0
    %122 = vmatprep.subr.mxu0 0.0
    %123 = vmatpush1.msra.mxu0 0.0
    %124 = vmatprep.subr.mxu0 0.0
    %125 = vmatpush1.msra.mxu0 0.0
    %126 = vmatprep.subr.mxu0 0.0
    %127 = vmatpush1.msra.mxu0 0.0
    %128 = vmatprep.subr.mxu0 0.0
    %129 = vmatpush1.msra.mxu0 0.0
    %130 = vmatprep.subr.mxu0 0.0
    %131 = vmatpush1.msra.mxu0 0.0
    %132 = vmatprep.subr.mxu0 0.0
    %133 = vmatpush1.msra.mxu0 0.0
    %134 = vmatprep.subr.mxu0 0.0
    %135 = vmatpush1.msra.mxu0 0.0
    %136 = vmatprep.subr.mxu0 0.0
    %137 = vmatpush1.msra.mxu0 0.0
    %138 = vmatprep.subr.mxu0 0.0
    %139 = vmatpush1.msra.mxu0 0.0
    %140 = vmatprep.subr.mxu0 0.0
    %141 = vmatpush1.msra.mxu0 0.0
    %142 = vmatprep.subr.mxu0 0.0
    %143 = vmatpush1.msra.mxu0 0.0
    %144 = vmatprep.subr.mxu0 0.0
    %145 = vmatpush1.msra.mxu0 0.0
    %146 = vmatprep.subr.mxu0 0.0
    %147 = vmatpush1.msra.mxu0 0.0
    %148 = vmatprep.subr.mxu0 0.0
    %149 = vmatpush1.msra.mxu0 0.0
    %150 = vmatprep.subr.mxu0 0.0
    %151 = vmatpush1.msra.mxu0 0.0
    %152 = vmatprep.subr.mxu0 0.0
    %153 = vmatpush1.msra.mxu0 0.0
    %154 = vmatprep.subr.mxu0 0.0
    %155 = vmatpush1.msra.mxu0 0.0
    %156 = vmatprep.subr.mxu0 0.0
    %157 = vmatpush1.msra.mxu0 0.0
    %158 = vmatprep.mubr.f32.mxu0 0.0
    %v159 = vand.u32 %v85, 4294901760
    %v160 = vsub.f32 %v85, %v159
    %v161 = vand.u32 %v160, 4294901760
    %v162 = vsub.f32 %v160, %v161
    %v163 = vand.u32 %v162, 4294901760
    %164 = vmatmul.mubr.f32.gmra.mrb[0].mxu0 %v163
    %v165 = vpop.f32.mrb[0].mxu0
    %v166 = vadd.f32 0.0, %v165
    %v167 = vpop.f32.mrb[0].mxu0
    %168 = vmatprep.mubr.f32.mxu0 0.0
    %v169 = vand.u32 %v88, 4294901760
    %v170 = vsub.f32 %v88, %v169
    %v171 = vand.u32 %v170, 4294901760
    %v172 = vsub.f32 %v170, %v171
    %v173 = vand.u32 %v172, 4294901760
    %174 = vmatmul.mubr.f32.gmra.mrb[0].mxu0 %v173
    %v175 = vpop.f32.mrb[0].mxu0
    %v176 = vadd.f32 0.0, %v175
    %v177 = vpop.f32.mrb[0].mxu0
    %178 = vdwg.mxu0
    %179 = vmatprep.subr.mxu0 0.0
    %v180 = vand.u32 %v79, 4294901760
    %v181 = vsub.f32 %v79, %v180
    %v182 = vand.u32 %v181, 4294901760
    %v183 = vsub.f32 %v181, %v182
    %v184 = vand.u32 %v183, 4294901760
    %185 = vmatpush1.msra.mxu0 %v184
    %186 = vmatprep.subr.mxu0 0.0
    %v187 = vand.u32 %v80, 4294901760
    %v188 = vsub.f32 %v80, %v187
    %v189 = vand.u32 %v188, 4294901760
    %v190 = vsub.f32 %v188, %v189
    %v191 = vand.u32 %v190, 4294901760
    %192 = vmatpush1.msra.mxu0 %v191
    %193 = vmatprep.subr.mxu0 0.0
    %v194 = vand.u32 %v81, 4294901760
    %v195 = vsub.f32 %v81, %v194
    %v196 = vand.u32 %v195, 4294901760
    %v197 = vsub.f32 %v195, %v196
    %v198 = vand.u32 %v197, 4294901760
    %199 = vmatpush1.msra.mxu0 %v198
    %200 = vmatprep.subr.mxu0 0.0
    %v201 = vand.u32 %v82, 4294901760
    %v202 = vsub.f32 %v82, %v201
    %v203 = vand.u32 %v202, 4294901760
    %v204 = vsub.f32 %v202, %v203
    %v205 = vand.u32 %v204, 4294901760
    %206 = vmatpush1.msra.mxu0 %v205
    %207 = vmatprep.subr.mxu0 0.0
    %208 = vmatpush1.msra.mxu0 0.0
    %209 = vmatprep.subr.mxu0 0.0
    %210 = vmatpush1.msra.mxu0 0.0
    %211 = vmatprep.subr.mxu0 0.0
    %212 = vmatpush1.msra.mxu0 0.0
    %213 = vmatprep.subr.mxu0 0.0
    %214 = vmatpush1.msra.mxu0 0.0
    %215 = vmatprep.subr.mxu0 0.0
    %216 = vmatpush1.msra.mxu0 0.0
    %217 = vmatprep.subr.mxu0 0.0
    %218 = vmatpush1.msra.mxu0 0.0
    %219 = vmatprep.subr.mxu0 0.0
    %220 = vmatpush1.msra.mxu0 0.0
    %221 = vmatprep.subr.mxu0 0.0
    %222 = vmatpush1.msra.mxu0 0.0
    %223 = vmatprep.subr.mxu0 0.0
    %224 = vmatpush1.msra.mxu0 0.0
    %225 = vmatprep.subr.mxu0 0.0
    %226 = vmatpush1.msra.mxu0 0.0
    %227 = vmatprep.subr.mxu0 0.0
    %228 = vmatpush1.msra.mxu0 0.0
    %229 = vmatprep.subr.mxu0 0.0
    %230 = vmatpush1.msra.mxu0 0.0
    %231 = vmatprep.subr.mxu0 0.0
    %232 = vmatpush1.msra.mxu0 0.0
    %233 = vmatprep.subr.mxu0 0.0
    %234 = vmatpush1.msra.mxu0 0.0
    %235 = vmatprep.subr.mxu0 0.0
    %236 = vmatpush1.msra.mxu0 0.0
    %237 = vmatprep.subr.mxu0 0.0
    %238 = vmatpush1.msra.mxu0 0.0
    %239 = vmatprep.subr.mxu0 0.0
    %240 = vmatpush1.msra.mxu0 0.0
    %241 = vmatprep.subr.mxu0 0.0
    %242 = vmatpush1.msra.mxu0 0.0
    %243 = vmatprep.subr.mxu0 0.0
    %244 = vmatpush1.msra.mxu0 0.0
    %245 = vmatprep.subr.mxu0 0.0
    %246 = vmatpush1.msra.mxu0 0.0
    %247 = vmatprep.subr.mxu0 0.0
    %248 = vmatpush1.msra.mxu0 0.0
    %249 = vmatprep.subr.mxu0 0.0
    %250 = vmatpush1.msra.mxu0 0.0
    %251 = vmatprep.subr.mxu0 0.0
    %252 = vmatpush1.msra.mxu0 0.0
    %253 = vmatprep.subr.mxu0 0.0
    %254 = vmatpush1.msra.mxu0 0.0
    %255 = vmatprep.subr.mxu0 0.0
    %256 = vmatpush1.msra.mxu0 0.0
    %257 = vmatprep.subr.mxu0 0.0
    %258 = vmatpush1.msra.mxu0 0.0
    %259 = vmatprep.subr.mxu0 0.0
    %260 = vmatpush1.msra.mxu0 0.0
    %261 = vmatprep.subr.mxu0 0.0
    %262 = vmatpush1.msra.mxu0 0.0
    %263 = vmatprep.mubr.f32.mxu0 0.0
    %v264 = vand.u32 %v85, 4294901760
    %265 = vmatmul.mubr.f32.gmra.mrb[0].mxu0 %v264
    %v266 = vpop.f32.mrb[0].mxu0
    %v267 = vadd.f32 %v166, %v266
    %v268 = vpop.f32.mrb[0].mxu0
    %269 = vmatprep.mubr.f32.mxu0 0.0
    %v270 = vand.u32 %v88, 4294901760
    %271 = vmatmul.mubr.f32.gmra.mrb[0].mxu0 %v270
    %v272 = vpop.f32.mrb[0].mxu0
    %v273 = vadd.f32 %v176, %v272
    %v274 = vpop.f32.mrb[0].mxu0
    %275 = vdwg.mxu0
    %276 = vmatprep.subr.mxu0 0.0
    %v277 = vand.u32 %v79, 4294901760
    %v278 = vsub.f32 %v79, %v277
    %279 = vmatpush1.msra.mxu0 %v278
    %280 = vmatprep.subr.mxu0 0.0
    %v281 = vand.u32 %v80, 4294901760
    %v282 = vsub.f32 %v80, %v281
    %283 = vmatpush1.msra.mxu0 %v282
    %284 = vmatprep.subr.mxu0 0.0
    %v285 = vand.u32 %v81, 4294901760
    %v286 = vsub.f32 %v81, %v285
    %287 = vmatpush1.msra.mxu0 %v286
    %288 = vmatprep.subr.mxu0 0.0
    %v289 = vand.u32 %v82, 4294901760
    %v290 = vsub.f32 %v82, %v289
    %291 = vmatpush1.msra.mxu0 %v290
    %292 = vmatprep.subr.mxu0 0.0
    %293 = vmatpush1.msra.mxu0 0.0
    %294 = vmatprep.subr.mxu0 0.0
    %295 = vmatpush1.msra.mxu0 0.0
    %296 = vmatprep.subr.mxu0 0.0
    %297 = vmatpush1.msra.mxu0 0.0
    %298 = vmatprep.subr.mxu0 0.0
    %299 = vmatpush1.msra.mxu0 0.0
    %300 = vmatprep.subr.mxu0 0.0
    %301 = vmatpush1.msra.mxu0 0.0
    %302 = vmatprep.subr.mxu0 0.0
    %303 = vmatpush1.msra.mxu0 0.0
    %304 = vmatprep.subr.mxu0 0.0
    %305 = vmatpush1.msra.mxu0 0.0
    %306 = vmatprep.subr.mxu0 0.0
    %307 = vmatpush1.msra.mxu0 0.0
    %308 = vmatprep.subr.mxu0 0.0
    %309 = vmatpush1.msra.mxu0 0.0
    %310 = vmatprep.subr.mxu0 0.0
    %311 = vmatpush1.msra.mxu0 0.0
    %312 = vmatprep.subr.mxu0 0.0
    %313 = vmatpush1.msra.mxu0 0.0
    %314 = vmatprep.subr.mxu0 0.0
    %315 = vmatpush1.msra.mxu0 0.0
    %316 = vmatprep.subr.mxu0 0.0
    %317 = vmatpush1.msra.mxu0 0.0
    %318 = vmatprep.subr.mxu0 0.0
    %319 = vmatpush1.msra.mxu0 0.0
    %320 = vmatprep.subr.mxu0 0.0
    %321 = vmatpush1.msra.mxu0 0.0
    %322 = vmatprep.subr.mxu0 0.0
    %323 = vmatpush1.msra.mxu0 0.0
    %324 = vmatprep.subr.mxu0 0.0
    %325 = vmatpush1.msra.mxu0 0.0
    %326 = vmatprep.subr.mxu0 0.0
    %327 = vmatpush1.msra.mxu0 0.0
    %328 = vmatprep.subr.mxu0 0.0
    %329 = vmatpush1.msra.mxu0 0.0
    %330 = vmatprep.subr.mxu0 0.0
    %331 = vmatpush1.msra.mxu0 0.0
    %332 = vmatprep.subr.mxu0 0.0
    %333 = vmatpush1.msra.mxu0 0.0
    %334 = vmatprep.subr.mxu0 0.0
    %335 = vmatpush1.msra.mxu0 0.0
    %336 = vmatprep.subr.mxu0 0.0
    %337 = vmatpush1.msra.mxu0 0.0
    %338 = vmatprep.subr.mxu0 0.0
    %339 = vmatpush1.msra.mxu0 0.0
    %340 = vmatprep.subr.mxu0 0.0
    %341 = vmatpush1.msra.mxu0 0.0
    %342 = vmatprep.subr.mxu0 0.0
    %343 = vmatpush1.msra.mxu0 0.0
    %344 = vmatprep.subr.mxu0 0.0
    %345 = vmatpush1.msra.mxu0 0.0
    %346 = vmatprep.subr.mxu0 0.0
    %347 = vmatpush1.msra.mxu0 0.0
    %348 = vmatprep.mubr.f32.mxu0 0.0
    %v349 = vand.u32 %v85, 4294901760
    %v350 = vsub.f32 %v85, %v349
    %351 = vmatmul.mubr.f32.gmra.mrb[0].mxu0 %v350
    %v352 = vpop.f32.mrb[0].mxu0
    %v353 = vadd.f32 %v267, %v352
    %v354 = vpop.f32.mrb[0].mxu0
    %355 = vmatprep.mubr.f32.mxu0 0.0
    %v356 = vand.u32 %v88, 4294901760
    %v357 = vsub.f32 %v88, %v356
    %358 = vmatmul.mubr.f32.gmra.mrb[0].mxu0 %v357
    %v359 = vpop.f32.mrb[0].mxu0
    %v360 = vadd.f32 %v273, %v359
    %v361 = vpop.f32.mrb[0].mxu0
    %362 = vdwg.mxu0
    %363 = vmatprep.subr.mxu0 0.0
    %v364 = vand.u32 %v79, 4294901760
    %365 = vmatpush1.msra.mxu0 %v364
    %366 = vmatprep.subr.mxu0 0.0
    %v367 = vand.u32 %v80, 4294901760
    %368 = vmatpush1.msra.mxu0 %v367
    %369 = vmatprep.subr.mxu0 0.0
    %v370 = vand.u32 %v81, 4294901760
    %371 = vmatpush1.msra.mxu0 %v370
    %372 = vmatprep.subr.mxu0 0.0
    %v373 = vand.u32 %v82, 4294901760
    %374 = vmatpush1.msra.mxu0 %v373
    %375 = vmatprep.subr.mxu0 0.0
    %376 = vmatpush1.msra.mxu0 0.0
    %377 = vmatprep.subr.mxu0 0.0
    %378 = vmatpush1.msra.mxu0 0.0
    %379 = vmatprep.subr.mxu0 0.0
    %380 = vmatpush1.msra.mxu0 0.0
    %381 = vmatprep.subr.mxu0 0.0
    %382 = vmatpush1.msra.mxu0 0.0
    %383 = vmatprep.subr.mxu0 0.0
    %384 = vmatpush1.msra.mxu0 0.0
    %385 = vmatprep.subr.mxu0 0.0
    %386 = vmatpush1.msra.mxu0 0.0
    %387 = vmatprep.subr.mxu0 0.0
    %388 = vmatpush1.msra.mxu0 0.0
    %389 = vmatprep.subr.mxu0 0.0
    %390 = vmatpush1.msra.mxu0 0.0
    %391 = vmatprep.subr.mxu0 0.0
    %392 = vmatpush1.msra.mxu0 0.0
    %393 = vmatprep.subr.mxu0 0.0
    %394 = vmatpush1.msra.mxu0 0.0
    %395 = vmatprep.subr.mxu0 0.0
    %396 = vmatpush1.msra.mxu0 0.0
    %397 = vmatprep.subr.mxu0 0.0
    %398 = vmatpush1.msra.mxu0 0.0
    %399 = vmatprep.subr.mxu0 0.0
    %400 = vmatpush1.msra.mxu0 0.0
    %401 = vmatprep.subr.mxu0 0.0
    %402 = vmatpush1.msra.mxu0 0.0
    %403 = vmatprep.subr.mxu0 0.0
    %404 = vmatpush1.msra.mxu0 0.0
    %405 = vmatprep.subr.mxu0 0.0
    %406 = vmatpush1.msra.mxu0 0.0
    %407 = vmatprep.subr.mxu0 0.0
    %408 = vmatpush1.msra.mxu0 0.0
    %409 = vmatprep.subr.mxu0 0.0
    %410 = vmatpush1.msra.mxu0 0.0
    %411 = vmatprep.subr.mxu0 0.0
    %412 = vmatpush1.msra.mxu0 0.0
    %413 = vmatprep.subr.mxu0 0.0
    %414 = vmatpush1.msra.mxu0 0.0
    %415 = vmatprep.subr.mxu0 0.0
    %416 = vmatpush1.msra.mxu0 0.0
    %417 = vmatprep.subr.mxu0 0.0
    %418 = vmatpush1.msra.mxu0 0.0
    %419 = vmatprep.subr.mxu0 0.0
    %420 = vmatpush1.msra.mxu0 0.0
    %421 = vmatprep.subr.mxu0 0.0
    %422 = vmatpush1.msra.mxu0 0.0
    %423 = vmatprep.subr.mxu0 0.0
    %424 = vmatpush1.msra.mxu0 0.0
    %425 = vmatprep.subr.mxu0 0.0
    %426 = vmatpush1.msra.mxu0 0.0
    %427 = vmatprep.subr.mxu0 0.0
    %428 = vmatpush1.msra.mxu0 0.0
    %429 = vmatprep.subr.mxu0 0.0
    %430 = vmatpush1.msra.mxu0 0.0
    %431 = vmatprep.mubr.f32.mxu0 0.0
    %v432 = vand.u32 %v85, 4294901760
    %v433 = vsub.f32 %v85, %v432
    %v434 = vand.u32 %v433, 4294901760
    %435 = vmatmul.mubr.f32.gmra.mrb[0].mxu0 %v434
    %v436 = vpop.f32.mrb[0].mxu0
    %v437 = vadd.f32 %v353, %v436
    %v438 = vpop.f32.mrb[0].mxu0
    %439 = vmatprep.mubr.f32.mxu0 0.0
    %v440 = vand.u32 %v88, 4294901760
    %v441 = vsub.f32 %v88, %v440
    %v442 = vand.u32 %v441, 4294901760
    %443 = vmatmul.mubr.f32.gmra.mrb[0].mxu0 %v442
    %v444 = vpop.f32.mrb[0].mxu0
    %v445 = vadd.f32 %v360, %v444
    %v446 = vpop.f32.mrb[0].mxu0
    %447 = vdwg.mxu0
    %448 = vmatprep.subr.mxu0 0.0
    %v449 = vand.u32 %v79, 4294901760
    %v450 = vsub.f32 %v79, %v449
    %v451 = vand.u32 %v450, 4294901760
    %452 = vmatpush1.msra.mxu0 %v451
    %453 = vmatprep.subr.mxu0 0.0
    %v454 = vand.u32 %v80, 4294901760
    %v455 = vsub.f32 %v80, %v454
    %v456 = vand.u32 %v455, 4294901760
    %457 = vmatpush1.msra.mxu0 %v456
    %458 = vmatprep.subr.mxu0 0.0
    %v459 = vand.u32 %v81, 4294901760
    %v460 = vsub.f32 %v81, %v459
    %v461 = vand.u32 %v460, 4294901760
    %462 = vmatpush1.msra.mxu0 %v461
    %463 = vmatprep.subr.mxu0 0.0
    %v464 = vand.u32 %v82, 4294901760
    %v465 = vsub.f32 %v82, %v464
    %v466 = vand.u32 %v465, 4294901760
    %467 = vmatpush1.msra.mxu0 %v466
    %468 = vmatprep.subr.mxu0 0.0
    %469 = vmatpush1.msra.mxu0 0.0
    %470 = vmatprep.subr.mxu0 0.0
    %471 = vmatpush1.msra.mxu0 0.0
    %472 = vmatprep.subr.mxu0 0.0
    %473 = vmatpush1.msra.mxu0 0.0
    %474 = vmatprep.subr.mxu0 0.0
    %475 = vmatpush1.msra.mxu0 0.0
    %476 = vmatprep.subr.mxu0 0.0
    %477 = vmatpush1.msra.mxu0 0.0
    %478 = vmatprep.subr.mxu0 0.0
    %479 = vmatpush1.msra.mxu0 0.0
    %480 = vmatprep.subr.mxu0 0.0
    %481 = vmatpush1.msra.mxu0 0.0
    %482 = vmatprep.subr.mxu0 0.0
    %483 = vmatpush1.msra.mxu0 0.0
    %484 = vmatprep.subr.mxu0 0.0
    %485 = vmatpush1.msra.mxu0 0.0
    %486 = vmatprep.subr.mxu0 0.0
    %487 = vmatpush1.msra.mxu0 0.0
    %488 = vmatprep.subr.mxu0 0.0
    %489 = vmatpush1.msra.mxu0 0.0
    %490 = vmatprep.subr.mxu0 0.0
    %491 = vmatpush1.msra.mxu0 0.0
    %492 = vmatprep.subr.mxu0 0.0
    %493 = vmatpush1.msra.mxu0 0.0
    %494 = vmatprep.subr.mxu0 0.0
    %495 = vmatpush1.msra.mxu0 0.0
    %496 = vmatprep.subr.mxu0 0.0
    %497 = vmatpush1.msra.mxu0 0.0
    %498 = vmatprep.subr.mxu0 0.0
    %499 = vmatpush1.msra.mxu0 0.0
    %500 = vmatprep.subr.mxu0 0.0
    %501 = vmatpush1.msra.mxu0 0.0
    %502 = vmatprep.subr.mxu0 0.0
    %503 = vmatpush1.msra.mxu0 0.0
    %504 = vmatprep.subr.mxu0 0.0
    %505 = vmatpush1.msra.mxu0 0.0
    %506 = vmatprep.subr.mxu0 0.0
    %507 = vmatpush1.msra.mxu0 0.0
    %508 = vmatprep.subr.mxu0 0.0
    %509 = vmatpush1.msra.mxu0 0.0
    %510 = vmatprep.subr.mxu0 0.0
    %511 = vmatpush1.msra.mxu0 0.0
    %512 = vmatprep.subr.mxu0 0.0
    %513 = vmatpush1.msra.mxu0 0.0
    %514 = vmatprep.subr.mxu0 0.0
    %515 = vmatpush1.msra.mxu0 0.0
    %516 = vmatprep.subr.mxu0 0.0
    %517 = vmatpush1.msra.mxu0 0.0
    %518 = vmatprep.subr.mxu0 0.0
    %519 = vmatpush1.msra.mxu0 0.0
    %520 = vmatprep.subr.mxu0 0.0
    %521 = vmatpush1.msra.mxu0 0.0
    %522 = vmatprep.subr.mxu0 0.0
    %523 = vmatpush1.msra.mxu0 0.0
    %524 = vmatprep.mubr.f32.mxu0 0.0
    %v525 = vand.u32 %v85, 4294901760
    %526 = vmatmul.mubr.f32.gmra.mrb[0].mxu0 %v525
    %v527 = vpop.f32.mrb[0].mxu0
    %v528 = vadd.f32 %v437, %v527
    %v529 = vpop.f32.mrb[0].mxu0
    %530 = vmatprep.mubr.f32.mxu0 0.0
    %v531 = vand.u32 %v88, 4294901760
    %532 = vmatmul.mubr.f32.gmra.mrb[0].mxu0 %v531
    %v533 = vpop.f32.mrb[0].mxu0
    %v534 = vadd.f32 %v445, %v533
    %v535 = vpop.f32.mrb[0].mxu0
    %536 = vdwg.mxu0
    %537 = vmatprep.subr.mxu0 0.0
    %v538 = vand.u32 %v79, 4294901760
    %539 = vmatpush1.msra.mxu0 %v538
    %540 = vmatprep.subr.mxu0 0.0
    %v541 = vand.u32 %v80, 4294901760
    %542 = vmatpush1.msra.mxu0 %v541
    %543 = vmatprep.subr.mxu0 0.0
    %v544 = vand.u32 %v81, 4294901760
    %545 = vmatpush1.msra.mxu0 %v544
    %546 = vmatprep.subr.mxu0 0.0
    %v547 = vand.u32 %v82, 4294901760
    %548 = vmatpush1.msra.mxu0 %v547
    %549 = vmatprep.subr.mxu0 0.0
    %550 = vmatpush1.msra.mxu0 0.0
    %551 = vmatprep.subr.mxu0 0.0
    %552 = vmatpush1.msra.mxu0 0.0
    %553 = vmatprep.subr.mxu0 0.0
    %554 = vmatpush1.msra.mxu0 0.0
    %555 = vmatprep.subr.mxu0 0.0
    %556 = vmatpush1.msra.mxu0 0.0
    %557 = vmatprep.subr.mxu0 0.0
    %558 = vmatpush1.msra.mxu0 0.0
    %559 = vmatprep.subr.mxu0 0.0
    %560 = vmatpush1.msra.mxu0 0.0
    %561 = vmatprep.subr.mxu0 0.0
    %562 = vmatpush1.msra.mxu0 0.0
    %563 = vmatprep.subr.mxu0 0.0
    %564 = vmatpush1.msra.mxu0 0.0
    %565 = vmatprep.subr.mxu0 0.0
    %566 = vmatpush1.msra.mxu0 0.0
    %567 = vmatprep.subr.mxu0 0.0
    %568 = vmatpush1.msra.mxu0 0.0
    %569 = vmatprep.subr.mxu0 0.0
    %570 = vmatpush1.msra.mxu0 0.0
    %571 = vmatprep.subr.mxu0 0.0
    %572 = vmatpush1.msra.mxu0 0.0
    %573 = vmatprep.subr.mxu0 0.0
    %574 = vmatpush1.msra.mxu0 0.0
    %575 = vmatprep.subr.mxu0 0.0
    %576 = vmatpush1.msra.mxu0 0.0
    %577 = vmatprep.subr.mxu0 0.0
    %578 = vmatpush1.msra.mxu0 0.0
    %579 = vmatprep.subr.mxu0 0.0
    %580 = vmatpush1.msra.mxu0 0.0
    %581 = vmatprep.subr.mxu0 0.0
    %582 = vmatpush1.msra.mxu0 0.0
    %583 = vmatprep.subr.mxu0 0.0
    %584 = vmatpush1.msra.mxu0 0.0
    %585 = vmatprep.subr.mxu0 0.0
    %586 = vmatpush1.msra.mxu0 0.0
    %587 = vmatprep.subr.mxu0 0.0
    %588 = vmatpush1.msra.mxu0 0.0
    %589 = vmatprep.subr.mxu0 0.0
    %590 = vmatpush1.msra.mxu0 0.0
    %591 = vmatprep.subr.mxu0 0.0
    %592 = vmatpush1.msra.mxu0 0.0
    %593 = vmatprep.subr.mxu0 0.0
    %594 = vmatpush1.msra.mxu0 0.0
    %595 = vmatprep.subr.mxu0 0.0
    %596 = vmatpush1.msra.mxu0 0.0
    %597 = vmatprep.subr.mxu0 0.0
    %598 = vmatpush1.msra.mxu0 0.0
    %599 = vmatprep.subr.mxu0 0.0
    %600 = vmatpush1.msra.mxu0 0.0
    %601 = vmatprep.subr.mxu0 0.0
    %602 = vmatpush1.msra.mxu0 0.0
    %603 = vmatprep.subr.mxu0 0.0
    %604 = vmatpush1.msra.mxu0 0.0
    %605 = vmatprep.mubr.f32.mxu0 0.0
    %v606 = vand.u32 %v85, 4294901760
    %607 = vmatmul.mubr.f32.gmra.mrb[0].mxu0 %v606
    %v608 = vpop.f32.mrb[0].mxu0
    %v609 = vadd.f32 %v528, %v608
    %v610 = vpop.f32.mrb[0].mxu0
    %611 = vmatprep.mubr.f32.mxu0 0.0
    %v612 = vand.u32 %v88, 4294901760
    %613 = vmatmul.mubr.f32.gmra.mrb[0].mxu0 %v612
    %v614 = vpop.f32.mrb[0].mxu0
    %v615 = vadd.f32 %v534, %v614
    %v616 = vpop.f32.mrb[0].mxu0
    %617 = vdwg.mxu0
    %618 = vst.msk [vmem:[#allocation10] sm:$0xff] %vm83, %v609
    %619 = vst.msk [vmem:[#allocation10 + $0x8] sm:$0xff] %vm83, %v615
    %v620 = vld [vmem:[#allocation7] sm:$0xff]
    %v621 = vld [vmem:[#allocation7 + $0x8] sm:$0xff]
    %v622 = vld [vmem:[#allocation7 + $0x10] sm:$0xff]
    %v623 = vld [vmem:[#allocation7 + $0x18] sm:$0xff]
    %624 = vmatprep.subr.mxu0 0.0
    %v625 = vand.u32 %v620, 4294901760
    %626 = vmatpush1.msra.mxu0 %v625
    %627 = vmatprep.subr.mxu0 0.0
    %v628 = vand.u32 %v621, 4294901760
    %629 = vmatpush1.msra.mxu0 %v628
    %630 = vmatprep.subr.mxu0 0.0
    %v631 = vand.u32 %v622, 4294901760
    %632 = vmatpush1.msra.mxu0 %v631
    %633 = vmatprep.subr.mxu0 0.0
    %v634 = vand.u32 %v623, 4294901760
    %635 = vmatpush1.msra.mxu0 %v634
    %636 = vmatprep.subr.mxu0 0.0
    %637 = vmatpush1.msra.mxu0 0.0
    %638 = vmatprep.subr.mxu0 0.0
    %639 = vmatpush1.msra.mxu0 0.0
    %640 = vmatprep.subr.mxu0 0.0
    %641 = vmatpush1.msra.mxu0 0.0
    %642 = vmatprep.subr.mxu0 0.0
    %643 = vmatpush1.msra.mxu0 0.0
    %644 = vmatprep.subr.mxu0 0.0
    %645 = vmatpush1.msra.mxu0 0.0
    %646 = vmatprep.subr.mxu0 0.0
    %647 = vmatpush1.msra.mxu0 0.0
    %648 = vmatprep.subr.mxu0 0.0
    %649 = vmatpush1.msra.mxu0 0.0
    %650 = vmatprep.subr.mxu0 0.0
    %651 = vmatpush1.msra.mxu0 0.0
    %652 = vmatprep.subr.mxu0 0.0
    %653 = vmatpush1.msra.mxu0 0.0
    %654 = vmatprep.subr.mxu0 0.0
    %655 = vmatpush1.msra.mxu0 0.0
    %656 = vmatprep.subr.mxu0 0.0
    %657 = vmatpush1.msra.mxu0 0.0
    %658 = vmatprep.subr.mxu0 0.0
    %659 = vmatpush1.msra.mxu0 0.0
    %660 = vmatprep.subr.mxu0 0.0
    %661 = vmatpush1.msra.mxu0 0.0
    %662 = vmatprep.subr.mxu0 0.0
    %663 = vmatpush1.msra.mxu0 0.0
    %664 = vmatprep.subr.mxu0 0.0
    %665 = vmatpush1.msra.mxu0 0.0
    %666 = vmatprep.subr.mxu0 0.0
    %667 = vmatpush1.msra.mxu0 0.0
    %668 = vmatprep.subr.mxu0 0.0
    %669 = vmatpush1.msra.mxu0 0.0
    %670 = vmatprep.subr.mxu0 0.0
    %671 = vmatpush1.msra.mxu0 0.0
    %672 = vmatprep.subr.mxu0 0.0
    %673 = vmatpush1.msra.mxu0 0.0
    %674 = vmatprep.subr.mxu0 0.0
    %675 = vmatpush1.msra.mxu0 0.0
    %676 = vmatprep.subr.mxu0 0.0
    %677 = vmatpush1.msra.mxu0 0.0
    %678 = vmatprep.subr.mxu0 0.0
    %679 = vmatpush1.msra.mxu0 0.0
    %680 = vmatprep.subr.mxu0 0.0
    %681 = vmatpush1.msra.mxu0 0.0
    %682 = vmatprep.subr.mxu0 0.0
    %683 = vmatpush1.msra.mxu0 0.0
    %684 = vmatprep.subr.mxu0 0.0
    %685 = vmatpush1.msra.mxu0 0.0
    %686 = vmatprep.subr.mxu0 0.0
    %687 = vmatpush1.msra.mxu0 0.0
    %688 = vmatprep.subr.mxu0 0.0
    %689 = vmatpush1.msra.mxu0 0.0
    %690 = vmatprep.subr.mxu0 0.0
    %691 = vmatpush1.msra.mxu0 0.0
    %692 = vmatprep.mubr.f32.mxu0 0.0
    %v693 = vand.u32 %v85, 4294901760
    %v694 = vsub.f32 %v85, %v693
    %v695 = vand.u32 %v694, 4294901760
    %v696 = vsub.f32 %v694, %v695
    %v697 = vand.u32 %v696, 4294901760
    %698 = vmatmul.mubr.f32.gmra.mrb[0].mxu0 %v697
    %v699 = vpop.f32.mrb[0].mxu0
    %v700 = vadd.f32 0.0, %v699
    %v701 = vpop.f32.mrb[0].mxu0
    %702 = vmatprep.mubr.f32.mxu0 0.0
    %v703 = vand.u32 %v88, 4294901760
    %v704 = vsub.f32 %v88, %v703
    %v705 = vand.u32 %v704, 4294901760
    %v706 = vsub.f32 %v704, %v705
    %v707 = vand.u32 %v706, 4294901760
    %708 = vmatmul.mubr.f32.gmra.mrb[0].mxu0 %v707
    %v709 = vpop.f32.mrb[0].mxu0
    %v710 = vadd.f32 0.0, %v709
    %v711 = vpop.f32.mrb[0].mxu0
    %712 = vdwg.mxu0
    %713 = vmatprep.subr.mxu0 0.0
    %v714 = vand.u32 %v620, 4294901760
    %v715 = vsub.f32 %v620, %v714
    %v716 = vand.u32 %v715, 4294901760
    %v717 = vsub.f32 %v715, %v716
    %v718 = vand.u32 %v717, 4294901760
    %719 = vmatpush1.msra.mxu0 %v718
    %720 = vmatprep.subr.mxu0 0.0
    %v721 = vand.u32 %v621, 4294901760
    %v722 = vsub.f32 %v621, %v721
    %v723 = vand.u32 %v722, 4294901760
    %v724 = vsub.f32 %v722, %v723
    %v725 = vand.u32 %v724, 4294901760
    %726 = vmatpush1.msra.mxu0 %v725
    %727 = vmatprep.subr.mxu0 0.0
    %v728 = vand.u32 %v622, 4294901760
    %v729 = vsub.f32 %v622, %v728
    %v730 = vand.u32 %v729, 4294901760
    %v731 = vsub.f32 %v729, %v730
    %v732 = vand.u32 %v731, 4294901760
    %733 = vmatpush1.msra.mxu0 %v732
    %734 = vmatprep.subr.mxu0 0.0
    %v735 = vand.u32 %v623, 4294901760
    %v736 = vsub.f32 %v623, %v735
    %v737 = vand.u32 %v736, 4294901760
    %v738 = vsub.f32 %v736, %v737
    %v739 = vand.u32 %v738, 4294901760
    %740 = vmatpush1.msra.mxu0 %v739
    %741 = vmatprep.subr.mxu0 0.0
    %742 = vmatpush1.msra.mxu0 0.0
    %743 = vmatprep.subr.mxu0 0.0
    %744 = vmatpush1.msra.mxu0 0.0
    %745 = vmatprep.subr.mxu0 0.0
    %746 = vmatpush1.msra.mxu0 0.0
    %747 = vmatprep.subr.mxu0 0.0
    %748 = vmatpush1.msra.mxu0 0.0
    %749 = vmatprep.subr.mxu0 0.0
    %750 = vmatpush1.msra.mxu0 0.0
    %751 = vmatprep.subr.mxu0 0.0
    %752 = vmatpush1.msra.mxu0 0.0
    %753 = vmatprep.subr.mxu0 0.0
    %754 = vmatpush1.msra.mxu0 0.0
    %755 = vmatprep.subr.mxu0 0.0
    %756 = vmatpush1.msra.mxu0 0.0
    %757 = vmatprep.subr.mxu0 0.0
    %758 = vmatpush1.msra.mxu0 0.0
    %759 = vmatprep.subr.mxu0 0.0
    %760 = vmatpush1.msra.mxu0 0.0
    %761 = vmatprep.subr.mxu0 0.0
    %762 = vmatpush1.msra.mxu0 0.0
    %763 = vmatprep.subr.mxu0 0.0
    %764 = vmatpush1.msra.mxu0 0.0
    %765 = vmatprep.subr.mxu0 0.0
    %766 = vmatpush1.msra.mxu0 0.0
    %767 = vmatprep.subr.mxu0 0.0
    %768 = vmatpush1.msra.mxu0 0.0
    %769 = vmatprep.subr.mxu0 0.0
    %770 = vmatpush1.msra.mxu0 0.0
    %771 = vmatprep.subr.mxu0 0.0
    %772 = vmatpush1.msra.mxu0 0.0
    %773 = vmatprep.subr.mxu0 0.0
    %774 = vmatpush1.msra.mxu0 0.0
    %775 = vmatprep.subr.mxu0 0.0
    %776 = vmatpush1.msra.mxu0 0.0
    %777 = vmatprep.subr.mxu0 0.0
    %778 = vmatpush1.msra.mxu0 0.0
    %779 = vmatprep.subr.mxu0 0.0
    %780 = vmatpush1.msra.mxu0 0.0
    %781 = vmatprep.subr.mxu0 0.0
    %782 = vmatpush1.msra.mxu0 0.0
    %783 = vmatprep.subr.mxu0 0.0
    %784 = vmatpush1.msra.mxu0 0.0
    %785 = vmatprep.subr.mxu0 0.0
    %786 = vmatpush1.msra.mxu0 0.0
    %787 = vmatprep.subr.mxu0 0.0
    %788 = vmatpush1.msra.mxu0 0.0
    %789 = vmatprep.subr.mxu0 0.0
    %790 = vmatpush1.msra.mxu0 0.0
    %791 = vmatprep.subr.mxu0 0.0
    %792 = vmatpush1.msra.mxu0 0.0
    %793 = vmatprep.subr.mxu0 0.0
    %794 = vmatpush1.msra.mxu0 0.0
    %795 = vmatprep.subr.mxu0 0.0
    %796 = vmatpush1.msra.mxu0 0.0
    %797 = vmatprep.mubr.f32.mxu0 0.0
    %v798 = vand.u32 %v85, 4294901760
    %799 = vmatmul.mubr.f32.gmra.mrb[0].mxu0 %v798
    %v800 = vpop.f32.mrb[0].mxu0
    %v801 = vadd.f32 %v700, %v800
    %v802 = vpop.f32.mrb[0].mxu0
    %803 = vmatprep.mubr.f32.mxu0 0.0
    %v804 = vand.u32 %v88, 4294901760
    %805 = vmatmul.mubr.f32.gmra.mrb[0].mxu0 %v804
    %v806 = vpop.f32.mrb[0].mxu0
    %v807 = vadd.f32 %v710, %v806
    %v808 = vpop.f32.mrb[0].mxu0
    %809 = vdwg.mxu0
    %810 = vmatprep.subr.mxu0 0.0
    %v811 = vand.u32 %v620, 4294901760
    %v812 = vsub.f32 %v620, %v811
    %813 = vmatpush1.msra.mxu0 %v812
    %814 = vmatprep.subr.mxu0 0.0
    %v815 = vand.u32 %v621, 4294901760
    %v816 = vsub.f32 %v621, %v815
    %817 = vmatpush1.msra.mxu0 %v816
    %818 = vmatprep.subr.mxu0 0.0
    %v819 = vand.u32 %v622, 4294901760
    %v820 = vsub.f32 %v622, %v819
    %821 = vmatpush1.msra.mxu0 %v820
    %822 = vmatprep.subr.mxu0 0.0
    %v823 = vand.u32 %v623, 4294901760
    %v824 = vsub.f32 %v623, %v823
    %825 = vmatpush1.msra.mxu0 %v824
    %826 = vmatprep.subr.mxu0 0.0
    %827 = vmatpush1.msra.mxu0 0.0
    %828 = vmatprep.subr.mxu0 0.0
    %829 = vmatpush1.msra.mxu0 0.0
    %830 = vmatprep.subr.mxu0 0.0
    %831 = vmatpush1.msra.mxu0 0.0
    %832 = vmatprep.subr.mxu0 0.0
    %833 = vmatpush1.msra.mxu0 0.0
    %834 = vmatprep.subr.mxu0 0.0
    %835 = vmatpush1.msra.mxu0 0.0
    %836 = vmatprep.subr.mxu0 0.0
    %837 = vmatpush1.msra.mxu0 0.0
    %838 = vmatprep.subr.mxu0 0.0
    %839 = vmatpush1.msra.mxu0 0.0
    %840 = vmatprep.subr.mxu0 0.0
    %841 = vmatpush1.msra.mxu0 0.0
    %842 = vmatprep.subr.mxu0 0.0
    %843 = vmatpush1.msra.mxu0 0.0
    %844 = vmatprep.subr.mxu0 0.0
    %845 = vmatpush1.msra.mxu0 0.0
    %846 = vmatprep.subr.mxu0 0.0
    %847 = vmatpush1.msra.mxu0 0.0
    %848 = vmatprep.subr.mxu0 0.0
    %849 = vmatpush1.msra.mxu0 0.0
    %850 = vmatprep.subr.mxu0 0.0
    %851 = vmatpush1.msra.mxu0 0.0
    %852 = vmatprep.subr.mxu0 0.0
    %853 = vmatpush1.msra.mxu0 0.0
    %854 = vmatprep.subr.mxu0 0.0
    %855 = vmatpush1.msra.mxu0 0.0
    %856 = vmatprep.subr.mxu0 0.0
    %857 = vmatpush1.msra.mxu0 0.0
    %858 = vmatprep.subr.mxu0 0.0
    %859 = vmatpush1.msra.mxu0 0.0
    %860 = vmatprep.subr.mxu0 0.0
    %861 = vmatpush1.msra.mxu0 0.0
    %862 = vmatprep.subr.mxu0 0.0
    %863 = vmatpush1.msra.mxu0 0.0
    %864 = vmatprep.subr.mxu0 0.0
    %865 = vmatpush1.msra.mxu0 0.0
    %866 = vmatprep.subr.mxu0 0.0
    %867 = vmatpush1.msra.mxu0 0.0
    %868 = vmatprep.subr.mxu0 0.0
    %869 = vmatpush1.msra.mxu0 0.0
    %870 = vmatprep.subr.mxu0 0.0
    %871 = vmatpush1.msra.mxu0 0.0
    %872 = vmatprep.subr.mxu0 0.0
    %873 = vmatpush1.msra.mxu0 0.0
    %874 = vmatprep.subr.mxu0 0.0
    %875 = vmatpush1.msra.mxu0 0.0
    %876 = vmatprep.subr.mxu0 0.0
    %877 = vmatpush1.msra.mxu0 0.0
    %878 = vmatprep.subr.mxu0 0.0
    %879 = vmatpush1.msra.mxu0 0.0
    %880 = vmatprep.subr.mxu0 0.0
    %881 = vmatpush1.msra.mxu0 0.0
    %882 = vmatprep.mubr.f32.mxu0 0.0
    %v883 = vand.u32 %v85, 4294901760
    %v884 = vsub.f32 %v85, %v883
    %885 = vmatmul.mubr.f32.gmra.mrb[0].mxu0 %v884
    %v886 = vpop.f32.mrb[0].mxu0
    %v887 = vadd.f32 %v801, %v886
    %v888 = vpop.f32.mrb[0].mxu0
    %889 = vmatprep.mubr.f32.mxu0 0.0
    %v890 = vand.u32 %v88, 4294901760
    %v891 = vsub.f32 %v88, %v890
    %892 = vmatmul.mubr.f32.gmra.mrb[0].mxu0 %v891
    %v893 = vpop.f32.mrb[0].mxu0
    %v894 = vadd.f32 %v807, %v893
    %v895 = vpop.f32.mrb[0].mxu0
    %896 = vdwg.mxu0
    %897 = vmatprep.subr.mxu0 0.0
    %v898 = vand.u32 %v620, 4294901760
    %899 = vmatpush1.msra.mxu0 %v898
    %900 = vmatprep.subr.mxu0 0.0
    %v901 = vand.u32 %v621, 4294901760
    %902 = vmatpush1.msra.mxu0 %v901
    %903 = vmatprep.subr.mxu0 0.0
    %v904 = vand.u32 %v622, 4294901760
    %905 = vmatpush1.msra.mxu0 %v904
    %906 = vmatprep.subr.mxu0 0.0
    %v907 = vand.u32 %v623, 4294901760
    %908 = vmatpush1.msra.mxu0 %v907
    %909 = vmatprep.subr.mxu0 0.0
    %910 = vmatpush1.msra.mxu0 0.0
    %911 = vmatprep.subr.mxu0 0.0
    %912 = vmatpush1.msra.mxu0 0.0
    %913 = vmatprep.subr.mxu0 0.0
    %914 = vmatpush1.msra.mxu0 0.0
    %915 = vmatprep.subr.mxu0 0.0
    %916 = vmatpush1.msra.mxu0 0.0
    %917 = vmatprep.subr.mxu0 0.0
    %918 = vmatpush1.msra.mxu0 0.0
    %919 = vmatprep.subr.mxu0 0.0
    %920 = vmatpush1.msra.mxu0 0.0
    %921 = vmatprep.subr.mxu0 0.0
    %922 = vmatpush1.msra.mxu0 0.0
    %923 = vmatprep.subr.mxu0 0.0
    %924 = vmatpush1.msra.mxu0 0.0
    %925 = vmatprep.subr.mxu0 0.0
    %926 = vmatpush1.msra.mxu0 0.0
    %927 = vmatprep.subr.mxu0 0.0
    %928 = vmatpush1.msra.mxu0 0.0
    %929 = vmatprep.subr.mxu0 0.0
    %930 = vmatpush1.msra.mxu0 0.0
    %931 = vmatprep.subr.mxu0 0.0
    %932 = vmatpush1.msra.mxu0 0.0
    %933 = vmatprep.subr.mxu0 0.0
    %934 = vmatpush1.msra.mxu0 0.0
    %935 = vmatprep.subr.mxu0 0.0
    %936 = vmatpush1.msra.mxu0 0.0
    %937 = vmatprep.subr.mxu0 0.0
    %938 = vmatpush1.msra.mxu0 0.0
    %939 = vmatprep.subr.mxu0 0.0
    %940 = vmatpush1.msra.mxu0 0.0
    %941 = vmatprep.subr.mxu0 0.0
    %942 = vmatpush1.msra.mxu0 0.0
    %943 = vmatprep.subr.mxu0 0.0
    %944 = vmatpush1.msra.mxu0 0.0
    %945 = vmatprep.subr.mxu0 0.0
    %946 = vmatpush1.msra.mxu0 0.0
    %947 = vmatprep.subr.mxu0 0.0
    %948 = vmatpush1.msra.mxu0 0.0
    %949 = vmatprep.subr.mxu0 0.0
    %950 = vmatpush1.msra.mxu0 0.0
    %951 = vmatprep.subr.mxu0 0.0
    %952 = vmatpush1.msra.mxu0 0.0
    %953 = vmatprep.subr.mxu0 0.0
    %954 = vmatpush1.msra.mxu0 0.0
    %955 = vmatprep.subr.mxu0 0.0
    %956 = vmatpush1.msra.mxu0 0.0
    %957 = vmatprep.subr.mxu0 0.0
    %958 = vmatpush1.msra.mxu0 0.0
    %959 = vmatprep.subr.mxu0 0.0
    %960 = vmatpush1.msra.mxu0 0.0
    %961 = vmatprep.subr.mxu0 0.0
    %962 = vmatpush1.msra.mxu0 0.0
    %963 = vmatprep.subr.mxu0 0.0
    %964 = vmatpush1.msra.mxu0 0.0
    %965 = vmatprep.mubr.f32.mxu0 0.0
    %v966 = vand.u32 %v85, 4294901760
    %v967 = vsub.f32 %v85, %v966
    %v968 = vand.u32 %v967, 4294901760
    %969 = vmatmul.mubr.f32.gmra.mrb[0].mxu0 %v968
    %v970 = vpop.f32.mrb[0].mxu0
    %v971 = vadd.f32 %v887, %v970
    %v972 = vpop.f32.mrb[0].mxu0
    %973 = vmatprep.mubr.f32.mxu0 0.0
    %v974 = vand.u32 %v88, 4294901760
    %v975 = vsub.f32 %v88, %v974
    %v976 = vand.u32 %v975, 4294901760
    %977 = vmatmul.mubr.f32.gmra.mrb[0].mxu0 %v976
    %v978 = vpop.f32.mrb[0].mxu0
    %v979 = vadd.f32 %v894, %v978
    %v980 = vpop.f32.mrb[0].mxu0
    %981 = vdwg.mxu0
    %982 = vmatprep.subr.mxu0 0.0
    %v983 = vand.u32 %v620, 4294901760
    %v984 = vsub.f32 %v620, %v983
    %v985 = vand.u32 %v984, 4294901760
    %986 = vmatpush1.msra.mxu0 %v985
    %987 = vmatprep.subr.mxu0 0.0
    %v988 = vand.u32 %v621, 4294901760
    %v989 = vsub.f32 %v621, %v988
    %v990 = vand.u32 %v989, 4294901760
    %991 = vmatpush1.msra.mxu0 %v990
    %992 = vmatprep.subr.mxu0 0.0
    %v993 = vand.u32 %v622, 4294901760
    %v994 = vsub.f32 %v622, %v993
    %v995 = vand.u32 %v994, 4294901760
    %996 = vmatpush1.msra.mxu0 %v995
    %997 = vmatprep.subr.mxu0 0.0
    %v998 = vand.u32 %v623, 4294901760
    %v999 = vsub.f32 %v623, %v998
    %v1000 = vand.u32 %v999, 4294901760
    %1001 = vmatpush1.msra.mxu0 %v1000
    %1002 = vmatprep.subr.mxu0 0.0
    %1003 = vmatpush1.msra.mxu0 0.0
    %1004 = vmatprep.subr.mxu0 0.0
    %1005 = vmatpush1.msra.mxu0 0.0
    %1006 = vmatprep.subr.mxu0 0.0
    %1007 = vmatpush1.msra.mxu0 0.0
    %1008 = vmatprep.subr.mxu0 0.0
    %1009 = vmatpush1.msra.mxu0 0.0
    %1010 = vmatprep.subr.mxu0 0.0
    %1011 = vmatpush1.msra.mxu0 0.0
    %1012 = vmatprep.subr.mxu0 0.0
    %1013 = vmatpush1.msra.mxu0 0.0
    %1014 = vmatprep.subr.mxu0 0.0
    %1015 = vmatpush1.msra.mxu0 0.0
    %1016 = vmatprep.subr.mxu0 0.0
    %1017 = vmatpush1.msra.mxu0 0.0
    %1018 = vmatprep.subr.mxu0 0.0
    %1019 = vmatpush1.msra.mxu0 0.0
    %1020 = vmatprep.subr.mxu0 0.0
    %1021 = vmatpush1.msra.mxu0 0.0
    %1022 = vmatprep.subr.mxu0 0.0
    %1023 = vmatpush1.msra.mxu0 0.0
    %1024 = vmatprep.subr.mxu0 0.0
    %1025 = vmatpush1.msra.mxu0 0.0
    %1026 = vmatprep.subr.mxu0 0.0
    %1027 = vmatpush1.msra.mxu0 0.0
    %1028 = vmatprep.subr.mxu0 0.0
    %1029 = vmatpush1.msra.mxu0 0.0
    %1030 = vmatprep.subr.mxu0 0.0
    %1031 = vmatpush1.msra.mxu0 0.0
    %1032 = vmatprep.subr.mxu0 0.0
    %1033 = vmatpush1.msra.mxu0 0.0
    %1034 = vmatprep.subr.mxu0 0.0
    %1035 = vmatpush1.msra.mxu0 0.0
    %1036 = vmatprep.subr.mxu0 0.0
    %1037 = vmatpush1.msra.mxu0 0.0
    %1038 = vmatprep.subr.mxu0 0.0
    %1039 = vmatpush1.msra.mxu0 0.0
    %1040 = vmatprep.subr.mxu0 0.0
    %1041 = vmatpush1.msra.mxu0 0.0
    %1042 = vmatprep.subr.mxu0 0.0
    %1043 = vmatpush1.msra.mxu0 0.0
    %1044 = vmatprep.subr.mxu0 0.0
    %1045 = vmatpush1.msra.mxu0 0.0
    %1046 = vmatprep.subr.mxu0 0.0
    %1047 = vmatpush1.msra.mxu0 0.0
    %1048 = vmatprep.subr.mxu0 0.0
    %1049 = vmatpush1.msra.mxu0 0.0
    %1050 = vmatprep.subr.mxu0 0.0
    %1051 = vmatpush1.msra.mxu0 0.0
    %1052 = vmatprep.subr.mxu0 0.0
    %1053 = vmatpush1.msra.mxu0 0.0
    %1054 = vmatprep.subr.mxu0 0.0
    %1055 = vmatpush1.msra.mxu0 0.0
    %1056 = vmatprep.subr.mxu0 0.0
    %1057 = vmatpush1.msra.mxu0 0.0
    %1058 = vmatprep.mubr.f32.mxu0 0.0
    %v1059 = vand.u32 %v85, 4294901760
    %1060 = vmatmul.mubr.f32.gmra.mrb[0].mxu0 %v1059
    %v1061 = vpop.f32.mrb[0].mxu0
    %v1062 = vadd.f32 %v971, %v1061
    %v1063 = vpop.f32.mrb[0].mxu0
    %1064 = vmatprep.mubr.f32.mxu0 0.0
    %v1065 = vand.u32 %v88, 4294901760
    %1066 = vmatmul.mubr.f32.gmra.mrb[0].mxu0 %v1065
    %v1067 = vpop.f32.mrb[0].mxu0
    %v1068 = vadd.f32 %v979, %v1067
    %v1069 = vpop.f32.mrb[0].mxu0
    %1070 = vdwg.mxu0
    %1071 = vmatprep.subr.mxu0 0.0
    %v1072 = vand.u32 %v620, 4294901760
    %1073 = vmatpush1.msra.mxu0 %v1072
    %1074 = vmatprep.subr.mxu0 0.0
    %v1075 = vand.u32 %v621, 4294901760
    %1076 = vmatpush1.msra.mxu0 %v1075
    %1077 = vmatprep.subr.mxu0 0.0
    %v1078 = vand.u32 %v622, 4294901760
    %1079 = vmatpush1.msra.mxu0 %v1078
    %1080 = vmatprep.subr.mxu0 0.0
    %v1081 = vand.u32 %v623, 4294901760
    %1082 = vmatpush1.msra.mxu0 %v1081
    %1083 = vmatprep.subr.mxu0 0.0
    %1084 = vmatpush1.msra.mxu0 0.0
    %1085 = vmatprep.subr.mxu0 0.0
    %1086 = vmatpush1.msra.mxu0 0.0
    %1087 = vmatprep.subr.mxu0 0.0
    %1088 = vmatpush1.msra.mxu0 0.0
    %1089 = vmatprep.subr.mxu0 0.0
    %1090 = vmatpush1.msra.mxu0 0.0
    %1091 = vmatprep.subr.mxu0 0.0
    %1092 = vmatpush1.msra.mxu0 0.0
    %1093 = vmatprep.subr.mxu0 0.0
    %1094 = vmatpush1.msra.mxu0 0.0
    %1095 = vmatprep.subr.mxu0 0.0
    %1096 = vmatpush1.msra.mxu0 0.0
    %1097 = vmatprep.subr.mxu0 0.0
    %1098 = vmatpush1.msra.mxu0 0.0
    %1099 = vmatprep.subr.mxu0 0.0
    %1100 = vmatpush1.msra.mxu0 0.0
    %1101 = vmatprep.subr.mxu0 0.0
    %1102 = vmatpush1.msra.mxu0 0.0
    %1103 = vmatprep.subr.mxu0 0.0
    %1104 = vmatpush1.msra.mxu0 0.0
    %1105 = vmatprep.subr.mxu0 0.0
    %1106 = vmatpush1.msra.mxu0 0.0
    %1107 = vmatprep.subr.mxu0 0.0
    %1108 = vmatpush1.msra.mxu0 0.0
    %1109 = vmatprep.subr.mxu0 0.0
    %1110 = vmatpush1.msra.mxu0 0.0
    %1111 = vmatprep.subr.mxu0 0.0
    %1112 = vmatpush1.msra.mxu0 0.0
    %1113 = vmatprep.subr.mxu0 0.0
    %1114 = vmatpush1.msra.mxu0 0.0
    %1115 = vmatprep.subr.mxu0 0.0
    %1116 = vmatpush1.msra.mxu0 0.0
    %1117 = vmatprep.subr.mxu0 0.0
    %1118 = vmatpush1.msra.mxu0 0.0
    %1119 = vmatprep.subr.mxu0 0.0
    %1120 = vmatpush1.msra.mxu0 0.0
    %1121 = vmatprep.subr.mxu0 0.0
    %1122 = vmatpush1.msra.mxu0 0.0
    %1123 = vmatprep.subr.mxu0 0.0
    %1124 = vmatpush1.msra.mxu0 0.0
    %1125 = vmatprep.subr.mxu0 0.0
    %1126 = vmatpush1.msra.mxu0 0.0
    %1127 = vmatprep.subr.mxu0 0.0
    %1128 = vmatpush1.msra.mxu0 0.0
    %1129 = vmatprep.subr.mxu0 0.0
    %1130 = vmatpush1.msra.mxu0 0.0
    %1131 = vmatprep.subr.mxu0 0.0
    %1132 = vmatpush1.msra.mxu0 0.0
    %1133 = vmatprep.subr.mxu0 0.0
    %1134 = vmatpush1.msra.mxu0 0.0
    %1135 = vmatprep.subr.mxu0 0.0
    %1136 = vmatpush1.msra.mxu0 0.0
    %1137 = vmatprep.subr.mxu0 0.0
    %1138 = vmatpush1.msra.mxu0 0.0
    %1139 = vmatprep.mubr.f32.mxu0 0.0
    %v1140 = vand.u32 %v85, 4294901760
    %1141 = vmatmul.mubr.f32.gmra.mrb[0].mxu0 %v1140
    %v1142 = vpop.f32.mrb[0].mxu0
    %v1143 = vadd.f32 %v1062, %v1142
    %v1144 = vpop.f32.mrb[0].mxu0
    %1145 = vmatprep.mubr.f32.mxu0 0.0
    %v1146 = vand.u32 %v88, 4294901760
    %1147 = vmatmul.mubr.f32.gmra.mrb[0].mxu0 %v1146
    %v1148 = vpop.f32.mrb[0].mxu0
    %v1149 = vadd.f32 %v1068, %v1148
    %v1150 = vpop.f32.mrb[0].mxu0
    %1151 = vdwg.mxu0
    %1152 = vst.msk [vmem:[#allocation11] sm:$0xff] %vm83, %v1143
    %1153 = vst.msk [vmem:[#allocation11 + $0x8] sm:$0xff] %vm83, %v1149
    %v1154 = vld [vmem:[#allocation8] sm:$0xff]
    %v1155 = vld [vmem:[#allocation8 + $0x8] sm:$0xff]
    %v1156 = vld [vmem:[#allocation8 + $0x10] sm:$0xff]
    %v1157 = vld [vmem:[#allocation8 + $0x18] sm:$0xff]
    %1158 = vmatprep.subr.mxu0 0.0
    %v1159 = vand.u32 %v1154, 4294901760
    %1160 = vmatpush1.msra.mxu0 %v1159
    %1161 = vmatprep.subr.mxu0 0.0
    %v1162 = vand.u32 %v1155, 4294901760
    %1163 = vmatpush1.msra.mxu0 %v1162
    %1164 = vmatprep.subr.mxu0 0.0
    %v1165 = vand.u32 %v1156, 4294901760
    %1166 = vmatpush1.msra.mxu0 %v1165
    %1167 = vmatprep.subr.mxu0 0.0
    %v1168 = vand.u32 %v1157, 4294901760
    %1169 = vmatpush1.msra.mxu0 %v1168
    %1170 = vmatprep.subr.mxu0 0.0
    %1171 = vmatpush1.msra.mxu0 0.0
    %1172 = vmatprep.subr.mxu0 0.0
    %1173 = vmatpush1.msra.mxu0 0.0
    %1174 = vmatprep.subr.mxu0 0.0
    %1175 = vmatpush1.msra.mxu0 0.0
    %1176 = vmatprep.subr.mxu0 0.0
    %1177 = vmatpush1.msra.mxu0 0.0
    %1178 = vmatprep.subr.mxu0 0.0
    %1179 = vmatpush1.msra.mxu0 0.0
    %1180 = vmatprep.subr.mxu0 0.0
    %1181 = vmatpush1.msra.mxu0 0.0
    %1182 = vmatprep.subr.mxu0 0.0
    %1183 = vmatpush1.msra.mxu0 0.0
    %1184 = vmatprep.subr.mxu0 0.0
    %1185 = vmatpush1.msra.mxu0 0.0
    %1186 = vmatprep.subr.mxu0 0.0
    %1187 = vmatpush1.msra.mxu0 0.0
    %1188 = vmatprep.subr.mxu0 0.0
    %1189 = vmatpush1.msra.mxu0 0.0
    %1190 = vmatprep.subr.mxu0 0.0
    %1191 = vmatpush1.msra.mxu0 0.0
    %1192 = vmatprep.subr.mxu0 0.0
    %1193 = vmatpush1.msra.mxu0 0.0
    %1194 = vmatprep.subr.mxu0 0.0
    %1195 = vmatpush1.msra.mxu0 0.0
    %1196 = vmatprep.subr.mxu0 0.0
    %1197 = vmatpush1.msra.mxu0 0.0
    %1198 = vmatprep.subr.mxu0 0.0
    %1199 = vmatpush1.msra.mxu0 0.0
    %1200 = vmatprep.subr.mxu0 0.0
    %1201 = vmatpush1.msra.mxu0 0.0
    %1202 = vmatprep.subr.mxu0 0.0
    %1203 = vmatpush1.msra.mxu0 0.0
    %1204 = vmatprep.subr.mxu0 0.0
    %1205 = vmatpush1.msra.mxu0 0.0
    %1206 = vmatprep.subr.mxu0 0.0
    %1207 = vmatpush1.msra.mxu0 0.0
    %1208 = vmatprep.subr.mxu0 0.0
    %1209 = vmatpush1.msra.mxu0 0.0
    %1210 = vmatprep.subr.mxu0 0.0
    %1211 = vmatpush1.msra.mxu0 0.0
    %1212 = vmatprep.subr.mxu0 0.0
    %1213 = vmatpush1.msra.mxu0 0.0
    %1214 = vmatprep.subr.mxu0 0.0
    %1215 = vmatpush1.msra.mxu0 0.0
    %1216 = vmatprep.subr.mxu0 0.0
    %1217 = vmatpush1.msra.mxu0 0.0
    %1218 = vmatprep.subr.mxu0 0.0
    %1219 = vmatpush1.msra.mxu0 0.0
    %1220 = vmatprep.subr.mxu0 0.0
    %1221 = vmatpush1.msra.mxu0 0.0
    %1222 = vmatprep.subr.mxu0 0.0
    %1223 = vmatpush1.msra.mxu0 0.0
    %1224 = vmatprep.subr.mxu0 0.0
    %1225 = vmatpush1.msra.mxu0 0.0
    %1226 = vmatprep.mubr.f32.mxu0 0.0
    %v1227 = vand.u32 %v85, 4294901760
    %v1228 = vsub.f32 %v85, %v1227
    %v1229 = vand.u32 %v1228, 4294901760
    %v1230 = vsub.f32 %v1228, %v1229
    %v1231 = vand.u32 %v1230, 4294901760
    %1232 = vmatmul.mubr.f32.gmra.mrb[0].mxu0 %v1231
    %v1233 = vpop.f32.mrb[0].mxu0
    %v1234 = vadd.f32 0.0, %v1233
    %v1235 = vpop.f32.mrb[0].mxu0
    %1236 = vmatprep.mubr.f32.mxu0 0.0
    %v1237 = vand.u32 %v88, 4294901760
    %v1238 = vsub.f32 %v88, %v1237
    %v1239 = vand.u32 %v1238, 4294901760
    %v1240 = vsub.f32 %v1238, %v1239
    %v1241 = vand.u32 %v1240, 4294901760
    %1242 = vmatmul.mubr.f32.gmra.mrb[0].mxu0 %v1241
    %v1243 = vpop.f32.mrb[0].mxu0
    %v1244 = vadd.f32 0.0, %v1243
    %v1245 = vpop.f32.mrb[0].mxu0
    %1246 = vdwg.mxu0
    %1247 = vmatprep.subr.mxu0 0.0
    %v1248 = vand.u32 %v1154, 4294901760
    %v1249 = vsub.f32 %v1154, %v1248
    %v1250 = vand.u32 %v1249, 4294901760
    %v1251 = vsub.f32 %v1249, %v1250
    %v1252 = vand.u32 %v1251, 4294901760
    %1253 = vmatpush1.msra.mxu0 %v1252
    %1254 = vmatprep.subr.mxu0 0.0
    %v1255 = vand.u32 %v1155, 4294901760
    %v1256 = vsub.f32 %v1155, %v1255
    %v1257 = vand.u32 %v1256, 4294901760
    %v1258 = vsub.f32 %v1256, %v1257
    %v1259 = vand.u32 %v1258, 4294901760
    %1260 = vmatpush1.msra.mxu0 %v1259
    %1261 = vmatprep.subr.mxu0 0.0
    %v1262 = vand.u32 %v1156, 4294901760
    %v1263 = vsub.f32 %v1156, %v1262
    %v1264 = vand.u32 %v1263, 4294901760
    %v1265 = vsub.f32 %v1263, %v1264
    %v1266 = vand.u32 %v1265, 4294901760
    %1267 = vmatpush1.msra.mxu0 %v1266
    %1268 = vmatprep.subr.mxu0 0.0
    %v1269 = vand.u32 %v1157, 4294901760
    %v1270 = vsub.f32 %v1157, %v1269
    %v1271 = vand.u32 %v1270, 4294901760
    %v1272 = vsub.f32 %v1270, %v1271
    %v1273 = vand.u32 %v1272, 4294901760
    %1274 = vmatpush1.msra.mxu0 %v1273
    %1275 = vmatprep.subr.mxu0 0.0
    %1276 = vmatpush1.msra.mxu0 0.0
    %1277 = vmatprep.subr.mxu0 0.0
    %1278 = vmatpush1.msra.mxu0 0.0
    %1279 = vmatprep.subr.mxu0 0.0
    %1280 = vmatpush1.msra.mxu0 0.0
    %1281 = vmatprep.subr.mxu0 0.0
    %1282 = vmatpush1.msra.mxu0 0.0
    %1283 = vmatprep.subr.mxu0 0.0
    %1284 = vmatpush1.msra.mxu0 0.0
    %1285 = vmatprep.subr.mxu0 0.0
    %1286 = vmatpush1.msra.mxu0 0.0
    %1287 = vmatprep.subr.mxu0 0.0
    %1288 = vmatpush1.msra.mxu0 0.0
    %1289 = vmatprep.subr.mxu0 0.0
    %1290 = vmatpush1.msra.mxu0 0.0
    %1291 = vmatprep.subr.mxu0 0.0
    %1292 = vmatpush1.msra.mxu0 0.0
    %1293 = vmatprep.subr.mxu0 0.0
    %1294 = vmatpush1.msra.mxu0 0.0
    %1295 = vmatprep.subr.mxu0 0.0
    %1296 = vmatpush1.msra.mxu0 0.0
    %1297 = vmatprep.subr.mxu0 0.0
    %1298 = vmatpush1.msra.mxu0 0.0
    %1299 = vmatprep.subr.mxu0 0.0
    %1300 = vmatpush1.msra.mxu0 0.0
    %1301 = vmatprep.subr.mxu0 0.0
    %1302 = vmatpush1.msra.mxu0 0.0
    %1303 = vmatprep.subr.mxu0 0.0
    %1304 = vmatpush1.msra.mxu0 0.0
    %1305 = vmatprep.subr.mxu0 0.0
    %1306 = vmatpush1.msra.mxu0 0.0
    %1307 = vmatprep.subr.mxu0 0.0
    %1308 = vmatpush1.msra.mxu0 0.0
    %1309 = vmatprep.subr.mxu0 0.0
    %1310 = vmatpush1.msra.mxu0 0.0
    %1311 = vmatprep.subr.mxu0 0.0
    %1312 = vmatpush1.msra.mxu0 0.0
    %1313 = vmatprep.subr.mxu0 0.0
    %1314 = vmatpush1.msra.mxu0 0.0
    %1315 = vmatprep.subr.mxu0 0.0
    %1316 = vmatpush1.msra.mxu0 0.0
    %1317 = vmatprep.subr.mxu0 0.0
    %1318 = vmatpush1.msra.mxu0 0.0
    %1319 = vmatprep.subr.mxu0 0.0
    %1320 = vmatpush1.msra.mxu0 0.0
    %1321 = vmatprep.subr.mxu0 0.0
    %1322 = vmatpush1.msra.mxu0 0.0
    %1323 = vmatprep.subr.mxu0 0.0
    %1324 = vmatpush1.msra.mxu0 0.0
    %1325 = vmatprep.subr.mxu0 0.0
    %1326 = vmatpush1.msra.mxu0 0.0
    %1327 = vmatprep.subr.mxu0 0.0
    %1328 = vmatpush1.msra.mxu0 0.0
    %1329 = vmatprep.subr.mxu0 0.0
    %1330 = vmatpush1.msra.mxu0 0.0
    %1331 = vmatprep.mubr.f32.mxu0 0.0
    %v1332 = vand.u32 %v85, 4294901760
    %1333 = vmatmul.mubr.f32.gmra.mrb[0].mxu0 %v1332
    %v1334 = vpop.f32.mrb[0].mxu0
    %v1335 = vadd.f32 %v1234, %v1334
    %v1336 = vpop.f32.mrb[0].mxu0
    %1337 = vmatprep.mubr.f32.mxu0 0.0
    %v1338 = vand.u32 %v88, 4294901760
    %1339 = vmatmul.mubr.f32.gmra.mrb[0].mxu0 %v1338
    %v1340 = vpop.f32.mrb[0].mxu0
    %v1341 = vadd.f32 %v1244, %v1340
    %v1342 = vpop.f32.mrb[0].mxu0
    %1343 = vdwg.mxu0
    %1344 = vmatprep.subr.mxu0 0.0
    %v1345 = vand.u32 %v1154, 4294901760
    %v1346 = vsub.f32 %v1154, %v1345
    %1347 = vmatpush1.msra.mxu0 %v1346
    %1348 = vmatprep.subr.mxu0 0.0
    %v1349 = vand.u32 %v1155, 4294901760
    %v1350 = vsub.f32 %v1155, %v1349
    %1351 = vmatpush1.msra.mxu0 %v1350
    %1352 = vmatprep.subr.mxu0 0.0
    %v1353 = vand.u32 %v1156, 4294901760
    %v1354 = vsub.f32 %v1156, %v1353
    %1355 = vmatpush1.msra.mxu0 %v1354
    %1356 = vmatprep.subr.mxu0 0.0
    %v1357 = vand.u32 %v1157, 4294901760
    %v1358 = vsub.f32 %v1157, %v1357
    %1359 = vmatpush1.msra.mxu0 %v1358
    %1360 = vmatprep.subr.mxu0 0.0
    %1361 = vmatpush1.msra.mxu0 0.0
    %1362 = vmatprep.subr.mxu0 0.0
    %1363 = vmatpush1.msra.mxu0 0.0
    %1364 = vmatprep.subr.mxu0 0.0
    %1365 = vmatpush1.msra.mxu0 0.0
    %1366 = vmatprep.subr.mxu0 0.0
    %1367 = vmatpush1.msra.mxu0 0.0
    %1368 = vmatprep.subr.mxu0 0.0
    %1369 = vmatpush1.msra.mxu0 0.0
    %1370 = vmatprep.subr.mxu0 0.0
    %1371 = vmatpush1.msra.mxu0 0.0
    %1372 = vmatprep.subr.mxu0 0.0
    %1373 = vmatpush1.msra.mxu0 0.0
    %1374 = vmatprep.subr.mxu0 0.0
    %1375 = vmatpush1.msra.mxu0 0.0
    %1376 = vmatprep.subr.mxu0 0.0
    %1377 = vmatpush1.msra.mxu0 0.0
    %1378 = vmatprep.subr.mxu0 0.0
    %1379 = vmatpush1.msra.mxu0 0.0
    %1380 = vmatprep.subr.mxu0 0.0
    %1381 = vmatpush1.msra.mxu0 0.0
    %1382 = vmatprep.subr.mxu0 0.0
    %1383 = vmatpush1.msra.mxu0 0.0
    %1384 = vmatprep.subr.mxu0 0.0
    %1385 = vmatpush1.msra.mxu0 0.0
    %1386 = vmatprep.subr.mxu0 0.0
    %1387 = vmatpush1.msra.mxu0 0.0
    %1388 = vmatprep.subr.mxu0 0.0
    %1389 = vmatpush1.msra.mxu0 0.0
    %1390 = vmatprep.subr.mxu0 0.0
    %1391 = vmatpush1.msra.mxu0 0.0
    %1392 = vmatprep.subr.mxu0 0.0
    %1393 = vmatpush1.msra.mxu0 0.0
    %1394 = vmatprep.subr.mxu0 0.0
    %1395 = vmatpush1.msra.mxu0 0.0
    %1396 = vmatprep.subr.mxu0 0.0
    %1397 = vmatpush1.msra.mxu0 0.0
    %1398 = vmatprep.subr.mxu0 0.0
    %1399 = vmatpush1.msra.mxu0 0.0
    %1400 = vmatprep.subr.mxu0 0.0
    %1401 = vmatpush1.msra.mxu0 0.0
    %1402 = vmatprep.subr.mxu0 0.0
    %1403 = vmatpush1.msra.mxu0 0.0
    %1404 = vmatprep.subr.mxu0 0.0
    %1405 = vmatpush1.msra.mxu0 0.0
    %1406 = vmatprep.subr.mxu0 0.0
    %1407 = vmatpush1.msra.mxu0 0.0
    %1408 = vmatprep.subr.mxu0 0.0
    %1409 = vmatpush1.msra.mxu0 0.0
    %1410 = vmatprep.subr.mxu0 0.0
    %1411 = vmatpush1.msra.mxu0 0.0
    %1412 = vmatprep.subr.mxu0 0.0
    %1413 = vmatpush1.msra.mxu0 0.0
    %1414 = vmatprep.subr.mxu0 0.0
    %1415 = vmatpush1.msra.mxu0 0.0
    %1416 = vmatprep.mubr.f32.mxu0 0.0
    %v1417 = vand.u32 %v85, 4294901760
    %v1418 = vsub.f32 %v85, %v1417
    %1419 = vmatmul.mubr.f32.gmra.mrb[0].mxu0 %v1418
    %v1420 = vpop.f32.mrb[0].mxu0
    %v1421 = vadd.f32 %v1335, %v1420
    %v1422 = vpop.f32.mrb[0].mxu0
    %1423 = vmatprep.mubr.f32.mxu0 0.0
    %v1424 = vand.u32 %v88, 4294901760
    %v1425 = vsub.f32 %v88, %v1424
    %1426 = vmatmul.mubr.f32.gmra.mrb[0].mxu0 %v1425
    %v1427 = vpop.f32.mrb[0].mxu0
    %v1428 = vadd.f32 %v1341, %v1427
    %v1429 = vpop.f32.mrb[0].mxu0
    %1430 = vdwg.mxu0
    %1431 = vmatprep.subr.mxu0 0.0
    %v1432 = vand.u32 %v1154, 4294901760
    %1433 = vmatpush1.msra.mxu0 %v1432
    %1434 = vmatprep.subr.mxu0 0.0
    %v1435 = vand.u32 %v1155, 4294901760
    %1436 = vmatpush1.msra.mxu0 %v1435
    %1437 = vmatprep.subr.mxu0 0.0
    %v1438 = vand.u32 %v1156, 4294901760
    %1439 = vmatpush1.msra.mxu0 %v1438
    %1440 = vmatprep.subr.mxu0 0.0
    %v1441 = vand.u32 %v1157, 4294901760
    %1442 = vmatpush1.msra.mxu0 %v1441
    %1443 = vmatprep.subr.mxu0 0.0
    %1444 = vmatpush1.msra.mxu0 0.0
    %1445 = vmatprep.subr.mxu0 0.0
    %1446 = vmatpush1.msra.mxu0 0.0
    %1447 = vmatprep.subr.mxu0 0.0
    %1448 = vmatpush1.msra.mxu0 0.0
    %1449 = vmatprep.subr.mxu0 0.0
    %1450 = vmatpush1.msra.mxu0 0.0
    %1451 = vmatprep.subr.mxu0 0.0
    %1452 = vmatpush1.msra.mxu0 0.0
    %1453 = vmatprep.subr.mxu0 0.0
    %1454 = vmatpush1.msra.mxu0 0.0
    %1455 = vmatprep.subr.mxu0 0.0
    %1456 = vmatpush1.msra.mxu0 0.0
    %1457 = vmatprep.subr.mxu0 0.0
    %1458 = vmatpush1.msra.mxu0 0.0
    %1459 = vmatprep.subr.mxu0 0.0
    %1460 = vmatpush1.msra.mxu0 0.0
    %1461 = vmatprep.subr.mxu0 0.0
    %1462 = vmatpush1.msra.mxu0 0.0
    %1463 = vmatprep.subr.mxu0 0.0
    %1464 = vmatpush1.msra.mxu0 0.0
    %1465 = vmatprep.subr.mxu0 0.0
    %1466 = vmatpush1.msra.mxu0 0.0
    %1467 = vmatprep.subr.mxu0 0.0
    %1468 = vmatpush1.msra.mxu0 0.0
    %1469 = vmatprep.subr.mxu0 0.0
    %1470 = vmatpush1.msra.mxu0 0.0
    %1471 = vmatprep.subr.mxu0 0.0
    %1472 = vmatpush1.msra.mxu0 0.0
    %1473 = vmatprep.subr.mxu0 0.0
    %1474 = vmatpush1.msra.mxu0 0.0
    %1475 = vmatprep.subr.mxu0 0.0
    %1476 = vmatpush1.msra.mxu0 0.0
    %1477 = vmatprep.subr.mxu0 0.0
    %1478 = vmatpush1.msra.mxu0 0.0
    %1479 = vmatprep.subr.mxu0 0.0
    %1480 = vmatpush1.msra.mxu0 0.0
    %1481 = vmatprep.subr.mxu0 0.0
    %1482 = vmatpush1.msra.mxu0 0.0
    %1483 = vmatprep.subr.mxu0 0.0
    %1484 = vmatpush1.msra.mxu0 0.0
    %1485 = vmatprep.subr.mxu0 0.0
    %1486 = vmatpush1.msra.mxu0 0.0
    %1487 = vmatprep.subr.mxu0 0.0
    %1488 = vmatpush1.msra.mxu0 0.0
    %1489 = vmatprep.subr.mxu0 0.0
    %1490 = vmatpush1.msra.mxu0 0.0
    %1491 = vmatprep.subr.mxu0 0.0
    %1492 = vmatpush1.msra.mxu0 0.0
    %1493 = vmatprep.subr.mxu0 0.0
    %1494 = vmatpush1.msra.mxu0 0.0
    %1495 = vmatprep.subr.mxu0 0.0
    %1496 = vmatpush1.msra.mxu0 0.0
    %1497 = vmatprep.subr.mxu0 0.0
    %1498 = vmatpush1.msra.mxu0 0.0
    %1499 = vmatprep.mubr.f32.mxu0 0.0
    %v1500 = vand.u32 %v85, 4294901760
    %v1501 = vsub.f32 %v85, %v1500
    %v1502 = vand.u32 %v1501, 4294901760
    %1503 = vmatmul.mubr.f32.gmra.mrb[0].mxu0 %v1502
    %v1504 = vpop.f32.mrb[0].mxu0
    %v1505 = vadd.f32 %v1421, %v1504
    %v1506 = vpop.f32.mrb[0].mxu0
    %1507 = vmatprep.mubr.f32.mxu0 0.0
    %v1508 = vand.u32 %v88, 4294901760
    %v1509 = vsub.f32 %v88, %v1508
    %v1510 = vand.u32 %v1509, 4294901760
    %1511 = vmatmul.mubr.f32.gmra.mrb[0].mxu0 %v1510
    %v1512 = vpop.f32.mrb[0].mxu0
    %v1513 = vadd.f32 %v1428, %v1512
    %v1514 = vpop.f32.mrb[0].mxu0
    %1515 = vdwg.mxu0
    %1516 = vmatprep.subr.mxu0 0.0
    %v1517 = vand.u32 %v1154, 4294901760
    %v1518 = vsub.f32 %v1154, %v1517
    %v1519 = vand.u32 %v1518, 4294901760
    %1520 = vmatpush1.msra.mxu0 %v1519
    %1521 = vmatprep.subr.mxu0 0.0
    %v1522 = vand.u32 %v1155, 4294901760
    %v1523 = vsub.f32 %v1155, %v1522
    %v1524 = vand.u32 %v1523, 4294901760
    %1525 = vmatpush1.msra.mxu0 %v1524
    %1526 = vmatprep.subr.mxu0 0.0
    %v1527 = vand.u32 %v1156, 4294901760
    %v1528 = vsub.f32 %v1156, %v1527
    %v1529 = vand.u32 %v1528, 4294901760
    %1530 = vmatpush1.msra.mxu0 %v1529
    %1531 = vmatprep.subr.mxu0 0.0
    %v1532 = vand.u32 %v1157, 4294901760
    %v1533 = vsub.f32 %v1157, %v1532
    %v1534 = vand.u32 %v1533, 4294901760
    %1535 = vmatpush1.msra.mxu0 %v1534
    %1536 = vmatprep.subr.mxu0 0.0
    %1537 = vmatpush1.msra.mxu0 0.0
    %1538 = vmatprep.subr.mxu0 0.0
    %1539 = vmatpush1.msra.mxu0 0.0
    %1540 = vmatprep.subr.mxu0 0.0
    %1541 = vmatpush1.msra.mxu0 0.0
    %1542 = vmatprep.subr.mxu0 0.0
    %1543 = vmatpush1.msra.mxu0 0.0
    %1544 = vmatprep.subr.mxu0 0.0
    %1545 = vmatpush1.msra.mxu0 0.0
    %1546 = vmatprep.subr.mxu0 0.0
    %1547 = vmatpush1.msra.mxu0 0.0
    %1548 = vmatprep.subr.mxu0 0.0
    %1549 = vmatpush1.msra.mxu0 0.0
    %1550 = vmatprep.subr.mxu0 0.0
    %1551 = vmatpush1.msra.mxu0 0.0
    %1552 = vmatprep.subr.mxu0 0.0
    %1553 = vmatpush1.msra.mxu0 0.0
    %1554 = vmatprep.subr.mxu0 0.0
    %1555 = vmatpush1.msra.mxu0 0.0
    %1556 = vmatprep.subr.mxu0 0.0
    %1557 = vmatpush1.msra.mxu0 0.0
    %1558 = vmatprep.subr.mxu0 0.0
    %1559 = vmatpush1.msra.mxu0 0.0
    %1560 = vmatprep.subr.mxu0 0.0
    %1561 = vmatpush1.msra.mxu0 0.0
    %1562 = vmatprep.subr.mxu0 0.0
    %1563 = vmatpush1.msra.mxu0 0.0
    %1564 = vmatprep.subr.mxu0 0.0
    %1565 = vmatpush1.msra.mxu0 0.0
    %1566 = vmatprep.subr.mxu0 0.0
    %1567 = vmatpush1.msra.mxu0 0.0
    %1568 = vmatprep.subr.mxu0 0.0
    %1569 = vmatpush1.msra.mxu0 0.0
    %1570 = vmatprep.subr.mxu0 0.0
    %1571 = vmatpush1.msra.mxu0 0.0
    %1572 = vmatprep.subr.mxu0 0.0
    %1573 = vmatpush1.msra.mxu0 0.0
    %1574 = vmatprep.subr.mxu0 0.0
    %1575 = vmatpush1.msra.mxu0 0.0
    %1576 = vmatprep.subr.mxu0 0.0
    %1577 = vmatpush1.msra.mxu0 0.0
    %1578 = vmatprep.subr.mxu0 0.0
    %1579 = vmatpush1.msra.mxu0 0.0
    %1580 = vmatprep.subr.mxu0 0.0
    %1581 = vmatpush1.msra.mxu0 0.0
    %1582 = vmatprep.subr.mxu0 0.0
    %1583 = vmatpush1.msra.mxu0 0.0
    %1584 = vmatprep.subr.mxu0 0.0
    %1585 = vmatpush1.msra.mxu0 0.0
    %1586 = vmatprep.subr.mxu0 0.0
    %1587 = vmatpush1.msra.mxu0 0.0
    %1588 = vmatprep.subr.mxu0 0.0
    %1589 = vmatpush1.msra.mxu0 0.0
    %1590 = vmatprep.subr.mxu0 0.0
    %1591 = vmatpush1.msra.mxu0 0.0
    %1592 = vmatprep.mubr.f32.mxu0 0.0
    %v1593 = vand.u32 %v85, 4294901760
    %1594 = vmatmul.mubr.f32.gmra.mrb[0].mxu0 %v1593
    %v1595 = vpop.f32.mrb[0].mxu0
    %v1596 = vadd.f32 %v1505, %v1595
    %v1597 = vpop.f32.mrb[0].mxu0
    %1598 = vmatprep.mubr.f32.mxu0 0.0
    %v1599 = vand.u32 %v88, 4294901760
    %1600 = vmatmul.mubr.f32.gmra.mrb[0].mxu0 %v1599
    %v1601 = vpop.f32.mrb[0].mxu0
    %v1602 = vadd.f32 %v1513, %v1601
    %v1603 = vpop.f32.mrb[0].mxu0
    %1604 = vdwg.mxu0
    %1605 = vmatprep.subr.mxu0 0.0
    %v1606 = vand.u32 %v1154, 4294901760
    %1607 = vmatpush1.msra.mxu0 %v1606
    %1608 = vmatprep.subr.mxu0 0.0
    %v1609 = vand.u32 %v1155, 4294901760
    %1610 = vmatpush1.msra.mxu0 %v1609
    %1611 = vmatprep.subr.mxu0 0.0
    %v1612 = vand.u32 %v1156, 4294901760
    %1613 = vmatpush1.msra.mxu0 %v1612
    %1614 = vmatprep.subr.mxu0 0.0
    %v1615 = vand.u32 %v1157, 4294901760
    %1616 = vmatpush1.msra.mxu0 %v1615
    %1617 = vmatprep.subr.mxu0 0.0
    %1618 = vmatpush1.msra.mxu0 0.0
    %1619 = vmatprep.subr.mxu0 0.0
    %1620 = vmatpush1.msra.mxu0 0.0
    %1621 = vmatprep.subr.mxu0 0.0
    %1622 = vmatpush1.msra.mxu0 0.0
    %1623 = vmatprep.subr.mxu0 0.0
    %1624 = vmatpush1.msra.mxu0 0.0
    %1625 = vmatprep.subr.mxu0 0.0
    %1626 = vmatpush1.msra.mxu0 0.0
    %1627 = vmatprep.subr.mxu0 0.0
    %1628 = vmatpush1.msra.mxu0 0.0
    %1629 = vmatprep.subr.mxu0 0.0
    %1630 = vmatpush1.msra.mxu0 0.0
    %1631 = vmatprep.subr.mxu0 0.0
    %1632 = vmatpush1.msra.mxu0 0.0
    %1633 = vmatprep.subr.mxu0 0.0
    %1634 = vmatpush1.msra.mxu0 0.0
    %1635 = vmatprep.subr.mxu0 0.0
    %1636 = vmatpush1.msra.mxu0 0.0
    %1637 = vmatprep.subr.mxu0 0.0
    %1638 = vmatpush1.msra.mxu0 0.0
    %1639 = vmatprep.subr.mxu0 0.0
    %1640 = vmatpush1.msra.mxu0 0.0
    %1641 = vmatprep.subr.mxu0 0.0
    %1642 = vmatpush1.msra.mxu0 0.0
    %1643 = vmatprep.subr.mxu0 0.0
    %1644 = vmatpush1.msra.mxu0 0.0
    %1645 = vmatprep.subr.mxu0 0.0
    %1646 = vmatpush1.msra.mxu0 0.0
    %1647 = vmatprep.subr.mxu0 0.0
    %1648 = vmatpush1.msra.mxu0 0.0
    %1649 = vmatprep.subr.mxu0 0.0
    %1650 = vmatpush1.msra.mxu0 0.0
    %1651 = vmatprep.subr.mxu0 0.0
    %1652 = vmatpush1.msra.mxu0 0.0
    %1653 = vmatprep.subr.mxu0 0.0
    %1654 = vmatpush1.msra.mxu0 0.0
    %1655 = vmatprep.subr.mxu0 0.0
    %1656 = vmatpush1.msra.mxu0 0.0
    %1657 = vmatprep.subr.mxu0 0.0
    %1658 = vmatpush1.msra.mxu0 0.0
    %1659 = vmatprep.subr.mxu0 0.0
    %1660 = vmatpush1.msra.mxu0 0.0
    %1661 = vmatprep.subr.mxu0 0.0
    %1662 = vmatpush1.msra.mxu0 0.0
    %1663 = vmatprep.subr.mxu0 0.0
    %1664 = vmatpush1.msra.mxu0 0.0
    %1665 = vmatprep.subr.mxu0 0.0
    %1666 = vmatpush1.msra.mxu0 0.0
    %1667 = vmatprep.subr.mxu0 0.0
    %1668 = vmatpush1.msra.mxu0 0.0
    %1669 = vmatprep.subr.mxu0 0.0
    %1670 = vmatpush1.msra.mxu0 0.0
    %1671 = vmatprep.subr.mxu0 0.0
    %1672 = vmatpush1.msra.mxu0 0.0
    %1673 = vmatprep.mubr.f32.mxu0 0.0
    %v1674 = vand.u32 %v85, 4294901760
    %1675 = vmatmul.mubr.f32.gmra.mrb[0].mxu0 %v1674
    %v1676 = vpop.f32.mrb[0].mxu0
    %v1677 = vadd.f32 %v1596, %v1676
    %v1678 = vpop.f32.mrb[0].mxu0
    %1679 = vmatprep.mubr.f32.mxu0 0.0
    %v1680 = vand.u32 %v88, 4294901760
    %1681 = vmatmul.mubr.f32.gmra.mrb[0].mxu0 %v1680
    %v1682 = vpop.f32.mrb[0].mxu0
    %v1683 = vadd.f32 %v1602, %v1682
    %v1684 = vpop.f32.mrb[0].mxu0
    %1685 = vdwg.mxu0
    %1686 = vst.msk [vmem:[#allocation13] sm:$0xff] %vm83, %v1677
    %1687 = vst.msk [vmem:[#allocation13 + $0x8] sm:$0xff] %vm83, %v1683
    // Predicated region
    $region34: #{tpu_custom_call.1} parent=1 // pred_check
      _
    $region35: #{tpu_custom_call.1} parent=1 // pred_check_branch
      %1689 = sbr.rel (0) target = $region37
    $region36: #{tpu_custom_call.1} parent=1 // pred_region
      %s1691 = ssub.s32 256, 256
      %1692 = vsyncadd [#allocation4], %s1691
      %s1693 = sshll.u32 [#allocation10], 4
      %s1694 = int_to_ptr.vmem [resolvable:$true] %s1693
      %1699 = dma.vmem_to_hbm [thread:$0]  %s1694, 256, %s4, [#allocation4], 128, 128, 8
    $region37: #{tpu_custom_call.1} parent=1 // pred_fallthru
      _
    // Predicated region
    $region38: #{tpu_custom_call.1} parent=1 // pred_check
      _
    $region39: #{tpu_custom_call.1} parent=1 // pred_check_branch
      %1701 = sbr.rel (0) target = $region41
    $region40: #{tpu_custom_call.1} parent=1 // pred_region
      %s1703 = ssub.s32 256, 256
      %1704 = vsyncadd [#allocation12], %s1703
      %s1705 = sshll.u32 [#allocation11], 4
      %s1706 = int_to_ptr.vmem [resolvable:$true] %s1705
      %1711 = dma.vmem_to_hbm [thread:$0]  %s1706, 256, %s5, [#allocation12], 128, 128, 8
    $region41: #{tpu_custom_call.1} parent=1 // pred_fallthru
      _
    // Predicated region
    $region42: #{tpu_custom_call.1} parent=1 // pred_check
      _
    $region43: #{tpu_custom_call.1} parent=1 // pred_check_branch
      %1713 = sbr.rel (0) target = $region45
    $region44: #{tpu_custom_call.1} parent=1 // pred_region
      %s1715 = ssub.s32 256, 256
      %1716 = vsyncadd [#allocation12], %s1715
      %s1717 = sshll.u32 [#allocation13], 4
      %s1718 = int_to_ptr.vmem [resolvable:$true] %s1717
      %1723 = dma.vmem_to_hbm [thread:$0]  %s1718, 256, %s6, [#allocation12], 128, 128, 8
    $region45: #{tpu_custom_call.1} parent=1 // pred_fallthru
      _
    // Predicated region
    $region46: #{tpu_custom_call.1} parent=1 // pred_check
      _
    $region47: #{tpu_custom_call.1} parent=1 // pred_check_branch
      %1725 = sbr.rel (0) target = $region49
    $region48: #{tpu_custom_call.1} parent=1 // pred_region
      %1726 = dma.done [#allocation4], 256
    $region49: #{tpu_custom_call.1} parent=1 // pred_fallthru
      _
    // Predicated region
    $region50: #{tpu_custom_call.1} parent=1 // pred_check
      _
    $region51: #{tpu_custom_call.1} parent=1 // pred_check_branch
      %1728 = sbr.rel (0) target = $region53
    $region52: #{tpu_custom_call.1} parent=1 // pred_region
      %1729 = dma.done [#allocation12], 256
    $region53: #{tpu_custom_call.1} parent=1 // pred_fallthru
      _
    // Predicated region
    $region54: #{tpu_custom_call.1} parent=1 // pred_check
      _
    $region55: #{tpu_custom_call.1} parent=1 // pred_check_branch
      %1731 = sbr.rel (0) target = $region57
    $region56: #{tpu_custom_call.1} parent=1 // pred_region
      %1732 = dma.done [#allocation12], 256
    $region57: #{tpu_custom_call.1} parent=1 // pred_fallthru
      _
    %1733 = vsyncpa [#allocation3], 1
    %1734 = vsyncpa [#allocation6], 1
    %1735 = vsyncpa [#allocation9], 1
    %1736 = vsyncpa [#allocation4], 1
    %1737 = vsyncpa [#allocation12], 1

</llo_original>
